<compile_context>
chip_gen: v7x
topology: tpu7x:2x2x1
jax: 0.10.0
libtpu: 0.0.40
codegen_flags: <defaults>
</compile_context>

<pallas_src>
import jax
import jax.numpy as jnp
from jax.experimental import pallas as pl
from jax.experimental.pallas import tpu as pltpu

INPUT_SIZE = 768
HIDDEN_SIZE = 128
OUTPUT_SIZE = 8
BATCH = 2
SEQ_LEN = 8


def rnn_fused_kernel(x_ref, h0_ref, wx_ref, whh_ref, who_ref, b_ref,
                     out_ref, hfin_ref, hhist):
    """Whole-sequence RNN forward, single kernel invocation (no grid).

    x_ref   : (T*Bp, in)      bf16  time-major inputs, batch padded to Bp
    h0_ref  : (Bp, hid)       fp32  initial hidden
    wx_ref  : (in, hid+out)   bf16  fused [W_xh | W_xo]
    whh_ref : (hid, hid)      bf16  recurrent weight
    who_ref : (hid, out)      bf16  hidden -> output weight
    b_ref   : (1, hid+out)    fp32  fused [b_h | b_o]
    out_ref : (T*Bp, out)     fp32  log-softmax outputs
    hfin_ref: (Bp, hid)       fp32  final hidden
    hhist   : (T*Bp, hid)     fp32  scratch: incoming hidden at every step
    """
    tb, _ = x_ref.shape
    bp, hid = h0_ref.shape
    T = tb // bp

    # ---- Hoisted, non-recurrent x-projection: one big MXU matmul over all
    #      T steps, bias folded in. ----
    z = (jnp.dot(x_ref[...], wx_ref[...], preferred_element_type=jnp.float32)
         + b_ref[...])                                 # (T*Bp, hid+out) fp32
    zh = z[:, :hid]                                    # feeds the recurrence
    zo = z[:, hid:]                                    # feeds the logits

    # ---- Serial recurrence: only one (Bp,hid)@(hid,hid) dot per step stays
    #      on the critical path.  T is static & tiny -> fully unrolled.
    #      fp32 carry; bf16 only at the MXU boundary. ----
    h = h0_ref[...]
    for t in range(T):
        lo, hi = t * bp, (t + 1) * bp
        hhist[lo:hi, :] = h                            # record *incoming* h_t
        h = zh[lo:hi, :] + jnp.dot(h.astype(whh_ref.dtype), whh_ref[...],
                                   preferred_element_type=jnp.float32)
    hfin_ref[...] = h

    # ---- Vectorized output path (off the serial chain): output projection
    #      + log-softmax for all T steps in one pass, one writeback. ----
    logits = zo + jnp.dot(hhist[...].astype(who_ref.dtype), who_ref[...],
                          preferred_element_type=jnp.float32)  # (T*Bp, out)
    m = jnp.max(logits, axis=-1, keepdims=True)
    shifted = logits - m
    lse = m + jnp.log(jnp.sum(jnp.exp(shifted), axis=-1, keepdims=True))
    out_ref[...] = (logits - lse).astype(out_ref.dtype)


def prepare_params(w_i2h, b_i2h, w_i2o, b_i2o, input_size=INPUT_SIZE,
                   compute_dtype=jnp.bfloat16):
    """One-time weight prep (hoisted out of the kernel).

    torch layout in:  w_i2h (hid, in+hid), w_i2o (out, in+hid).
    Kernel layout out: W_x (in, hid+out), W_hh (hid, hid), W_ho (hid, out),
                       b (1, hid+out).
    """
    w_i2h_t = w_i2h.T                                  # (in+hid, hid)
    w_i2o_t = w_i2o.T                                  # (in+hid, out)
    w_x = jnp.concatenate([w_i2h_t[:input_size], w_i2o_t[:input_size]],
                          axis=1).astype(compute_dtype)          # (in, hid+out)
    w_hh = w_i2h_t[input_size:].astype(compute_dtype)            # (hid, hid)
    w_ho = w_i2o_t[input_size:].astype(compute_dtype)            # (hid, out)
    b_all = jnp.concatenate([b_i2h, b_i2o]).reshape(1, -1).astype(jnp.float32)
    return w_x, w_hh, w_ho, b_all


@jax.jit
def rnn_forward_sequence(xs, h0, w_x, w_hh, w_ho, b_all):
    """xs: (T, B, input_size), h0: (B, hidden).
    Returns (log-softmax outputs (T, B, out_size), final hidden (B, hidden))."""
    T, B, in_sz = xs.shape
    hid = h0.shape[1]
    fused = w_x.shape[1]
    out_sz = fused - hid

    # Pad batch to a full 8-row fp32 sublane tile; the x-projection is batched
    # over T*Bp rows so MXU M-utilization no longer depends on B alone.
    b_pad = max(8, -(-B // 8) * 8)
    xs_p = jnp.zeros((T, b_pad, in_sz), w_x.dtype).at[:, :B].set(
        xs.astype(w_x.dtype))
    xs2d = xs_p.reshape(T * b_pad, in_sz)       # reshape hoisted out of kernel
    h0_p = jnp.zeros((b_pad, hid), jnp.float32).at[:B].set(
        h0.astype(jnp.float32))

    w_bytes = jnp.dtype(w_x.dtype).itemsize
    cost = pl.CostEstimate(
        flops=2 * T * b_pad * (in_sz * fused + hid * hid + hid * out_sz),
        transcendentals=T * b_pad * (out_sz + 1),
        bytes_accessed=(xs2d.size * w_bytes
                        + (w_x.size + w_hh.size + w_ho.size) * w_bytes
                        + b_all.size * 4 + h0_p.size * 4
                        + T * b_pad * out_sz * 4 + b_pad * hid * 4),
    )

    out2d, h_fin = pl.pallas_call(
        rnn_fused_kernel,
        out_shape=(jax.ShapeDtypeStruct((T * b_pad, out_sz), jnp.float32),
                   jax.ShapeDtypeStruct((b_pad, hid), jnp.float32)),
        # No grid: all operands fit comfortably in VMEM on v5e/v6e/v7x, and the
        # recurrence cannot pipeline across time anyway.
        scratch_shapes=[pltpu.VMEM((T * b_pad, hid), jnp.float32)],
        cost_estimate=cost,
    )(xs2d, h0_p, w_x, w_hh, w_ho, b_all)

    return out2d.reshape(T, b_pad, out_sz)[:, :B], h_fin[:B]


def rnn_forward(x, h, w_x, w_hh, w_ho, b_all):
    """Single-step forward matching RNN.forward(input, hidden) -> (output, hidden)."""
    out, new_h = rnn_forward_sequence(x[None], h, w_x, w_hh, w_ho, b_all)
    return out[0], new_h


if __name__ == "__main__":
    key = jax.random.PRNGKey(0)
    k1, k2, k3, k4, k5 = jax.random.split(key, 5)

    # Deterministic synthetic parameters (torch nn.Linear shapes).
    bound = 1.0 / jnp.sqrt(INPUT_SIZE + HIDDEN_SIZE)
    w_i2h = jax.random.uniform(k1, (HIDDEN_SIZE, INPUT_SIZE + HIDDEN_SIZE),
                               jnp.float32, -bound, bound)
    b_i2h = jax.random.uniform(k2, (HIDDEN_SIZE,), jnp.float32, -bound, bound)
    w_i2o = jax.random.uniform(k3, (OUTPUT_SIZE, INPUT_SIZE + HIDDEN_SIZE),
                               jnp.float32, -bound, bound)
    b_i2o = jax.random.uniform(k4, (OUTPUT_SIZE,), jnp.float32, -bound, bound)

    xs = jax.random.normal(k5, (SEQ_LEN, BATCH, INPUT_SIZE), jnp.float32)
    h0 = jnp.zeros((BATCH, HIDDEN_SIZE), jnp.float32)   # RNN.initHidden per batch row

    # One-time weight prep (transpose + split/fuse + bf16 cast).
    w_x, w_hh, w_ho, b_all = prepare_params(w_i2h, b_i2h, w_i2o, b_i2o)

    outs, h_fin = rnn_forward_sequence(xs, h0, w_x, w_hh, w_ho, b_all)
    jax.block_until_ready((outs, h_fin))

    # Single-step API (module's forward(input, hidden)) sanity check.
    out1, h1 = rnn_forward(xs[0], h0, w_x, w_hh, w_ho, b_all)
    jax.block_until_ready((out1, h1))

    # Reference: per-step cat + linear + log_softmax with the same bf16-rounded
    # weights/activations and fp32 accumulation (apples-to-apples with the MXU).
    wx_f = w_x.astype(jnp.float32)
    whh_f = w_hh.astype(jnp.float32)
    who_f = w_ho.astype(jnp.float32)
    h = h0
    ref_outs = []
    for t in range(SEQ_LEN):
        x_t = xs[t].astype(jnp.bfloat16).astype(jnp.float32)
        h_lo = h.astype(jnp.bfloat16).astype(jnp.float32)
        z = x_t @ wx_f + b_all                        # (B, hid+out)
        new_h = z[:, :HIDDEN_SIZE] + h_lo @ whh_f
        logits = z[:, HIDDEN_SIZE:] + h_lo @ who_f    # uses *incoming* hidden
        ref_outs.append(logits - jax.scipy.special.logsumexp(
            logits, axis=-1, keepdims=True))
        h = new_h
    ref_outs = jnp.stack(ref_outs)

    assert jnp.allclose(h_fin, h, atol=1e-3, rtol=1e-3), "hidden mismatch"
    assert jnp.allclose(outs, ref_outs, atol=1e-3, rtol=1e-3), "output mismatch"
    assert jnp.allclose(out1, ref_outs[0], atol=1e-3, rtol=1e-3), "single-step mismatch"

    print("KERNEL_OK")
</pallas_src>

<mosaic_0001>
module attributes {stable_mosaic.version = 11 : i64} {
  func.func @rnn_fused_kernel(%arg0: memref<64x768xbf16, #tpu.memory_space<vmem>>, %arg1: memref<8x128xf32, #tpu.memory_space<vmem>>, %arg2: memref<768x136xbf16, #tpu.memory_space<vmem>>, %arg3: memref<128x128xbf16, #tpu.memory_space<vmem>>, %arg4: memref<128x8xbf16, #tpu.memory_space<vmem>>, %arg5: memref<1x136xf32, #tpu.memory_space<vmem>>, %arg6: memref<64x8xf32, #tpu.memory_space<vmem>>, %arg7: memref<8x128xf32, #tpu.memory_space<vmem>>, %arg8: memref<64x128xf32, #tpu.memory_space<vmem>>) attributes {dimension_semantics = [], scalar_prefetch = 0 : i64, scratch_operands = 1 : i64, tpu.core_type = #tpu.core_type<tc>} {
    %c0 = arith.constant 0 : index
    %c0_0 = arith.constant 0 : index
    %0 = vector.load %arg0[%c0, %c0_0] : memref<64x768xbf16, #tpu.memory_space<vmem>>, vector<64x768xbf16>
    %c0_1 = arith.constant 0 : index
    %c0_2 = arith.constant 0 : index
    %1 = vector.load %arg2[%c0_1, %c0_2] : memref<768x136xbf16, #tpu.memory_space<vmem>>, vector<768x136xbf16>
    %cst = arith.constant dense<0.000000e+00> : vector<64x136xf32>
    %2 = tpu.matmul %0, %1, %cst {dimension_numbers = #tpu.dot_dimension_numbers<[1], [0], [0], [1], [0, 0, 1, 1], [], []>} : vector<64x768xbf16>, vector<768x136xbf16>, vector<64x136xf32> -> vector<64x136xf32>
    %c0_3 = arith.constant 0 : index
    %c0_4 = arith.constant 0 : index
    %3 = vector.load %arg5[%c0_3, %c0_4] : memref<1x136xf32, #tpu.memory_space<vmem>>, vector<1x136xf32>
    %4 = vector.broadcast %3 : vector<1x136xf32> to vector<64x136xf32>
    %5 = arith.addf %2, %4 : vector<64x136xf32>
    %6 = vector.extract_strided_slice %5 {offsets = [0, 0], sizes = [64, 128], strides = [1, 1]} : vector<64x136xf32> to vector<64x128xf32>
    %7 = vector.extract_strided_slice %5 {offsets = [0, 128], sizes = [64, 8], strides = [1, 1]} : vector<64x136xf32> to vector<64x8xf32>
    %c0_5 = arith.constant 0 : index
    %c0_6 = arith.constant 0 : index
    %8 = vector.load %arg1[%c0_5, %c0_6] : memref<8x128xf32, #tpu.memory_space<vmem>>, vector<8x128xf32>
    %c0_7 = arith.constant 0 : index
    %c0_8 = arith.constant 0 : index
    %9 = vector.load %arg8[%c0_7, %c0_8] : memref<64x128xf32, #tpu.memory_space<vmem>>, vector<8x128xf32>
    tpu.vector_store %arg8[%c0_7, %c0_8], %8 {strides = array<i32>} : memref<64x128xf32, #tpu.memory_space<vmem>>, vector<8x128xf32>,
    %10 = vector.extract_strided_slice %6 {offsets = [0, 0], sizes = [8, 128], strides = [1, 1]} : vector<64x128xf32> to vector<8x128xf32>
    %11 = arith.truncf %8 : vector<8x128xf32> to vector<8x128xbf16>
    %c0_9 = arith.constant 0 : index
    %c0_10 = arith.constant 0 : index
    %12 = vector.load %arg3[%c0_9, %c0_10] : memref<128x128xbf16, #tpu.memory_space<vmem>>, vector<128x128xbf16>
    %cst_11 = arith.constant dense<0.000000e+00> : vector<8x128xf32>
    %13 = tpu.matmul %11, %12, %cst_11 {dimension_numbers = #tpu.dot_dimension_numbers<[1], [0], [0], [1], [0, 0, 1, 1], [], []>} : vector<8x128xbf16>, vector<128x128xbf16>, vector<8x128xf32> -> vector<8x128xf32>
    %14 = arith.addf %10, %13 : vector<8x128xf32>
    %c8 = arith.constant 8 : index
    %c0_12 = arith.constant 0 : index
    %15 = vector.load %arg8[%c8, %c0_12] : memref<64x128xf32, #tpu.memory_space<vmem>>, vector<8x128xf32>
    tpu.vector_store %arg8[%c8, %c0_12], %14 {strides = array<i32>} : memref<64x128xf32, #tpu.memory_space<vmem>>, vector<8x128xf32>,
    %16 = vector.extract_strided_slice %6 {offsets = [8, 0], sizes = [8, 128], strides = [1, 1]} : vector<64x128xf32> to vector<8x128xf32>
    %17 = arith.truncf %14 : vector<8x128xf32> to vector<8x128xbf16>
    %c0_13 = arith.constant 0 : index
    %c0_14 = arith.constant 0 : index
    %18 = vector.load %arg3[%c0_13, %c0_14] : memref<128x128xbf16, #tpu.memory_space<vmem>>, vector<128x128xbf16>
    %cst_15 = arith.constant dense<0.000000e+00> : vector<8x128xf32>
    %19 = tpu.matmul %17, %18, %cst_15 {dimension_numbers = #tpu.dot_dimension_numbers<[1], [0], [0], [1], [0, 0, 1, 1], [], []>} : vector<8x128xbf16>, vector<128x128xbf16>, vector<8x128xf32> -> vector<8x128xf32>
    %20 = arith.addf %16, %19 : vector<8x128xf32>
    %c16 = arith.constant 16 : index
    %c0_16 = arith.constant 0 : index
    %21 = vector.load %arg8[%c16, %c0_16] : memref<64x128xf32, #tpu.memory_space<vmem>>, vector<8x128xf32>
    tpu.vector_store %arg8[%c16, %c0_16], %20 {strides = array<i32>} : memref<64x128xf32, #tpu.memory_space<vmem>>, vector<8x128xf32>,
    %22 = vector.extract_strided_slice %6 {offsets = [16, 0], sizes = [8, 128], strides = [1, 1]} : vector<64x128xf32> to vector<8x128xf32>
    %23 = arith.truncf %20 : vector<8x128xf32> to vector<8x128xbf16>
    %c0_17 = arith.constant 0 : index
    %c0_18 = arith.constant 0 : index
    %24 = vector.load %arg3[%c0_17, %c0_18] : memref<128x128xbf16, #tpu.memory_space<vmem>>, vector<128x128xbf16>
    %cst_19 = arith.constant dense<0.000000e+00> : vector<8x128xf32>
    %25 = tpu.matmul %23, %24, %cst_19 {dimension_numbers = #tpu.dot_dimension_numbers<[1], [0], [0], [1], [0, 0, 1, 1], [], []>} : vector<8x128xbf16>, vector<128x128xbf16>, vector<8x128xf32> -> vector<8x128xf32>
    %26 = arith.addf %22, %25 : vector<8x128xf32>
    %c24 = arith.constant 24 : index
    %c0_20 = arith.constant 0 : index
    %27 = vector.load %arg8[%c24, %c0_20] : memref<64x128xf32, #tpu.memory_space<vmem>>, vector<8x128xf32>
    tpu.vector_store %arg8[%c24, %c0_20], %26 {strides = array<i32>} : memref<64x128xf32, #tpu.memory_space<vmem>>, vector<8x128xf32>,
    %28 = vector.extract_strided_slice %6 {offsets = [24, 0], sizes = [8, 128], strides = [1, 1]} : vector<64x128xf32> to vector<8x128xf32>
    %29 = arith.truncf %26 : vector<8x128xf32> to vector<8x128xbf16>
    %c0_21 = arith.constant 0 : index
    %c0_22 = arith.constant 0 : index
    %30 = vector.load %arg3[%c0_21, %c0_22] : memref<128x128xbf16, #tpu.memory_space<vmem>>, vector<128x128xbf16>
    %cst_23 = arith.constant dense<0.000000e+00> : vector<8x128xf32>
    %31 = tpu.matmul %29, %30, %cst_23 {dimension_numbers = #tpu.dot_dimension_numbers<[1], [0], [0], [1], [0, 0, 1, 1], [], []>} : vector<8x128xbf16>, vector<128x128xbf16>, vector<8x128xf32> -> vector<8x128xf32>
    %32 = arith.addf %28, %31 : vector<8x128xf32>
    %c32 = arith.constant 32 : index
    %c0_24 = arith.constant 0 : index
    %33 = vector.load %arg8[%c32, %c0_24] : memref<64x128xf32, #tpu.memory_space<vmem>>, vector<8x128xf32>
    tpu.vector_store %arg8[%c32, %c0_24], %32 {strides = array<i32>} : memref<64x128xf32, #tpu.memory_space<vmem>>, vector<8x128xf32>,
    %34 = vector.extract_strided_slice %6 {offsets = [32, 0], sizes = [8, 128], strides = [1, 1]} : vector<64x128xf32> to vector<8x128xf32>
    %35 = arith.truncf %32 : vector<8x128xf32> to vector<8x128xbf16>
    %c0_25 = arith.constant 0 : index
    %c0_26 = arith.constant 0 : index
    %36 = vector.load %arg3[%c0_25, %c0_26] : memref<128x128xbf16, #tpu.memory_space<vmem>>, vector<128x128xbf16>
    %cst_27 = arith.constant dense<0.000000e+00> : vector<8x128xf32>
    %37 = tpu.matmul %35, %36, %cst_27 {dimension_numbers = #tpu.dot_dimension_numbers<[1], [0], [0], [1], [0, 0, 1, 1], [], []>} : vector<8x128xbf16>, vector<128x128xbf16>, vector<8x128xf32> -> vector<8x128xf32>
    %38 = arith.addf %34, %37 : vector<8x128xf32>
    %c40 = arith.constant 40 : index
    %c0_28 = arith.constant 0 : index
    %39 = vector.load %arg8[%c40, %c0_28] : memref<64x128xf32, #tpu.memory_space<vmem>>, vector<8x128xf32>
    tpu.vector_store %arg8[%c40, %c0_28], %38 {strides = array<i32>} : memref<64x128xf32, #tpu.memory_space<vmem>>, vector<8x128xf32>,
    %40 = vector.extract_strided_slice %6 {offsets = [40, 0], sizes = [8, 128], strides = [1, 1]} : vector<64x128xf32> to vector<8x128xf32>
    %41 = arith.truncf %38 : vector<8x128xf32> to vector<8x128xbf16>
    %c0_29 = arith.constant 0 : index
    %c0_30 = arith.constant 0 : index
    %42 = vector.load %arg3[%c0_29, %c0_30] : memref<128x128xbf16, #tpu.memory_space<vmem>>, vector<128x128xbf16>
    %cst_31 = arith.constant dense<0.000000e+00> : vector<8x128xf32>
    %43 = tpu.matmul %41, %42, %cst_31 {dimension_numbers = #tpu.dot_dimension_numbers<[1], [0], [0], [1], [0, 0, 1, 1], [], []>} : vector<8x128xbf16>, vector<128x128xbf16>, vector<8x128xf32> -> vector<8x128xf32>
    %44 = arith.addf %40, %43 : vector<8x128xf32>
    %c48 = arith.constant 48 : index
    %c0_32 = arith.constant 0 : index
    %45 = vector.load %arg8[%c48, %c0_32] : memref<64x128xf32, #tpu.memory_space<vmem>>, vector<8x128xf32>
    tpu.vector_store %arg8[%c48, %c0_32], %44 {strides = array<i32>} : memref<64x128xf32, #tpu.memory_space<vmem>>, vector<8x128xf32>,
    %46 = vector.extract_strided_slice %6 {offsets = [48, 0], sizes = [8, 128], strides = [1, 1]} : vector<64x128xf32> to vector<8x128xf32>
    %47 = arith.truncf %44 : vector<8x128xf32> to vector<8x128xbf16>
    %c0_33 = arith.constant 0 : index
    %c0_34 = arith.constant 0 : index
    %48 = vector.load %arg3[%c0_33, %c0_34] : memref<128x128xbf16, #tpu.memory_space<vmem>>, vector<128x128xbf16>
    %cst_35 = arith.constant dense<0.000000e+00> : vector<8x128xf32>
    %49 = tpu.matmul %47, %48, %cst_35 {dimension_numbers = #tpu.dot_dimension_numbers<[1], [0], [0], [1], [0, 0, 1, 1], [], []>} : vector<8x128xbf16>, vector<128x128xbf16>, vector<8x128xf32> -> vector<8x128xf32>
    %50 = arith.addf %46, %49 : vector<8x128xf32>
    %c56 = arith.constant 56 : index
    %c0_36 = arith.constant 0 : index
    %51 = vector.load %arg8[%c56, %c0_36] : memref<64x128xf32, #tpu.memory_space<vmem>>, vector<8x128xf32>
    tpu.vector_store %arg8[%c56, %c0_36], %50 {strides = array<i32>} : memref<64x128xf32, #tpu.memory_space<vmem>>, vector<8x128xf32>,
    %52 = vector.extract_strided_slice %6 {offsets = [56, 0], sizes = [8, 128], strides = [1, 1]} : vector<64x128xf32> to vector<8x128xf32>
    %53 = arith.truncf %50 : vector<8x128xf32> to vector<8x128xbf16>
    %c0_37 = arith.constant 0 : index
    %c0_38 = arith.constant 0 : index
    %54 = vector.load %arg3[%c0_37, %c0_38] : memref<128x128xbf16, #tpu.memory_space<vmem>>, vector<128x128xbf16>
    %cst_39 = arith.constant dense<0.000000e+00> : vector<8x128xf32>
    %55 = tpu.matmul %53, %54, %cst_39 {dimension_numbers = #tpu.dot_dimension_numbers<[1], [0], [0], [1], [0, 0, 1, 1], [], []>} : vector<8x128xbf16>, vector<128x128xbf16>, vector<8x128xf32> -> vector<8x128xf32>
    %56 = arith.addf %52, %55 : vector<8x128xf32>
    %c0_40 = arith.constant 0 : index
    %c0_41 = arith.constant 0 : index
    %57 = vector.load %arg7[%c0_40, %c0_41] : memref<8x128xf32, #tpu.memory_space<vmem>>, vector<8x128xf32>
    tpu.vector_store %arg7[%c0_40, %c0_41], %56 {strides = array<i32>} : memref<8x128xf32, #tpu.memory_space<vmem>>, vector<8x128xf32>,
    %c0_42 = arith.constant 0 : index
    %c0_43 = arith.constant 0 : index
    %58 = vector.load %arg8[%c0_42, %c0_43] : memref<64x128xf32, #tpu.memory_space<vmem>>, vector<64x128xf32>
    %59 = arith.truncf %58 : vector<64x128xf32> to vector<64x128xbf16>
    %c0_44 = arith.constant 0 : index
    %c0_45 = arith.constant 0 : index
    %60 = vector.load %arg4[%c0_44, %c0_45] : memref<128x8xbf16, #tpu.memory_space<vmem>>, vector<128x8xbf16>
    %cst_46 = arith.constant dense<0.000000e+00> : vector<64x8xf32>
    %61 = tpu.matmul %59, %60, %cst_46 {dimension_numbers = #tpu.dot_dimension_numbers<[1], [0], [0], [1], [0, 0, 1, 1], [], []>} : vector<64x128xbf16>, vector<128x8xbf16>, vector<64x8xf32> -> vector<64x8xf32>
    %62 = arith.addf %7, %61 : vector<64x8xf32>
    %cst_47 = arith.constant dense<0xFF800000> : vector<64xf32>
    %63 = vector.multi_reduction <maximumf>, %62, %cst_47 [1] : vector<64x8xf32> to vector<64xf32>
    %64 = vector.shape_cast %63 : vector<64xf32> to vector<64x1xf32>
    %65 = vector.broadcast %64 : vector<64x1xf32> to vector<64x8xf32>
    %66 = arith.subf %62, %65 : vector<64x8xf32>
    %67 = math.exp %66 : vector<64x8xf32>
    %cst_48 = arith.constant dense<0.000000e+00> : vector<64xf32>
    %68 = vector.multi_reduction <add>, %67, %cst_48 [1] : vector<64x8xf32> to vector<64xf32>
    %69 = vector.shape_cast %68 : vector<64xf32> to vector<64x1xf32>
    %70 = math.log %69 : vector<64x1xf32>
    %71 = arith.addf %64, %70 : vector<64x1xf32>
    %72 = vector.broadcast %71 : vector<64x1xf32> to vector<64x8xf32>
    %73 = arith.subf %62, %72 : vector<64x8xf32>
    %c0_49 = arith.constant 0 : index
    %c0_50 = arith.constant 0 : index
    %74 = vector.load %arg6[%c0_49, %c0_50] : memref<64x8xf32, #tpu.memory_space<vmem>>, vector<64x8xf32>
    tpu.vector_store %arg6[%c0_49, %c0_50], %73 {strides = array<i32>} : memref<64x8xf32, #tpu.memory_space<vmem>>, vector<64x8xf32>,
    return
  }
}

</mosaic_0001>

<llo_original>
// kernel: rnn_forward_sequence.1
$region0: #{rnn_forward_sequence.1}
  #allocation0 [shape = 'u32[]', space=smem, size = 0x4, offset = 0x4, fixed_abs, tag = 'smem constant byte address 0x4 - core index']
  #allocation1 [shape = 'u32[144,128]{1,0:T(1,128)}', space=vmem, size = 0x12000, scoped, tag = 'internal scratch']
  #allocation2 [shape = 'f32[64,128]{1,0:T(8,128)}', space=vmem, size = 0x8000, scoped, tag = 'scratch operand']
  %s0 = inlined_call_operand.vmem [shape: bf16[64,768], index: 0, kind: input, shape index: {}]
  %s1 = inlined_call_operand.vmem [shape: f32[8,128], index: 1, kind: input, shape index: {}]
  %s2 = inlined_call_operand.vmem [shape: bf16[768,136], index: 2, kind: input, shape index: {}]
  %s3 = inlined_call_operand.vmem [shape: bf16[128,128], index: 3, kind: input, shape index: {}]
  %s4 = inlined_call_operand.vmem [shape: bf16[128,8], index: 4, kind: input, shape index: {}]
  %s5 = inlined_call_operand.vmem [shape: f32[1,136], index: 5, kind: input, shape index: {}]
  %s6 = inlined_call_operand.vmem [shape: f32[64,8], index: 6, kind: output, shape index: {0}]
  %s7 = inlined_call_operand.vmem [shape: f32[8,128], index: 7, kind: output, shape index: {1}]
  %8 = xla_tuple %s6, %s7
  %s9 = sld [smem:[#allocation0]]
  $region42: #{rnn_forward_sequence.1} parent=0
    _
  %s11 = ssub.s32 1, %s9
  %s12 = scalar_select 0, %s11, %s9
  // Predicated region
  $region2: #{rnn_forward_sequence.1} parent=0 // pred_check
    _
  $region3: #{rnn_forward_sequence.1} parent=0 // pred_check_branch
    %14 = sbr.rel (0) target = $region5
  $region4: #{rnn_forward_sequence.1} parent=0 // pred_region
    _
  $region5: #{rnn_forward_sequence.1} parent=0 // pred_fallthru
    _
  // Predicated region
  $region6: #{rnn_forward_sequence.1} parent=0 // pred_check
    _
  $region7: #{rnn_forward_sequence.1} parent=0 // pred_check_branch
    %16 = sbr.rel (0) target = $region9
  $region8: #{rnn_forward_sequence.1} parent=0 // pred_region
    _
  $region9: #{rnn_forward_sequence.1} parent=0 // pred_fallthru
    _
  // Predicated region
  $region10: #{rnn_forward_sequence.1} parent=0 // pred_check
    _
  $region11: #{rnn_forward_sequence.1} parent=0 // pred_check_branch
    %18 = sbr.rel (0) target = $region13
  $region12: #{rnn_forward_sequence.1} parent=0 // pred_region
    _
  $region13: #{rnn_forward_sequence.1} parent=0 // pred_fallthru
    _
  // Predicated region
  $region14: #{rnn_forward_sequence.1} parent=0 // pred_check
    _
  $region15: #{rnn_forward_sequence.1} parent=0 // pred_check_branch
    %20 = sbr.rel (0) target = $region17
  $region16: #{rnn_forward_sequence.1} parent=0 // pred_region
    _
  $region17: #{rnn_forward_sequence.1} parent=0 // pred_fallthru
    _
  // Predicated region
  $region18: #{rnn_forward_sequence.1} parent=0 // pred_check
    _
  $region19: #{rnn_forward_sequence.1} parent=0 // pred_check_branch
    %22 = sbr.rel (0) target = $region21
  $region20: #{rnn_forward_sequence.1} parent=0 // pred_region
    _
  $region21: #{rnn_forward_sequence.1} parent=0 // pred_fallthru
    _
  // Predicated region
  $region22: #{rnn_forward_sequence.1} parent=0 // pred_check
    _
  $region23: #{rnn_forward_sequence.1} parent=0 // pred_check_branch
    %24 = sbr.rel (0) target = $region25
  $region24: #{rnn_forward_sequence.1} parent=0 // pred_region
    _
  $region25: #{rnn_forward_sequence.1} parent=0 // pred_fallthru
    _
  %v26 = vld [vmem:[%s0] sm:$0xff]
  %v27 = vld [vmem:[%s0 + $0x8] sm:$0xff]
  %v28 = vld [vmem:[%s0 + $0x10] sm:$0xff]
  %v29 = vld [vmem:[%s0 + $0x18] sm:$0xff]
  %v30 = vld [vmem:[%s0 + $0x20] sm:$0xff]
  %v31 = vld [vmem:[%s0 + $0x28] sm:$0xff]
  %v32 = vld [vmem:[%s0 + $0x30] sm:$0xff]
  %v33 = vld [vmem:[%s0 + $0x38] sm:$0xff]
  %v34 = vld [vmem:[%s0 + $0x40] sm:$0xff]
  %v35 = vld [vmem:[%s0 + $0x48] sm:$0xff]
  %v36 = vld [vmem:[%s0 + $0x50] sm:$0xff]
  %v37 = vld [vmem:[%s0 + $0x58] sm:$0xff]
  %v38 = vld [vmem:[%s0 + $0x60] sm:$0xff]
  %v39 = vld [vmem:[%s0 + $0x68] sm:$0xff]
  %v40 = vld [vmem:[%s0 + $0x70] sm:$0xff]
  %v41 = vld [vmem:[%s0 + $0x78] sm:$0xff]
  %v42 = vld [vmem:[%s0 + $0x80] sm:$0xff]
  %v43 = vld [vmem:[%s0 + $0x88] sm:$0xff]
  %v44 = vld [vmem:[%s0 + $0x90] sm:$0xff]
  %v45 = vld [vmem:[%s0 + $0x98] sm:$0xff]
  %v46 = vld [vmem:[%s0 + $0xa0] sm:$0xff]
  %v47 = vld [vmem:[%s0 + $0xa8] sm:$0xff]
  %v48 = vld [vmem:[%s0 + $0xb0] sm:$0xff]
  %v49 = vld [vmem:[%s0 + $0xb8] sm:$0xff]
  %v50 = vld [vmem:[%s2] sm:$0xff]
  %v51 = vld [vmem:[%s2 + $0x8] sm:$0xff]
  %v52 = vld [vmem:[%s2 + $0x10] sm:$0xff]
  %v53 = vld [vmem:[%s2 + $0x18] sm:$0xff]
  %v54 = vld [vmem:[%s2 + $0x20] sm:$0xff]
  %v55 = vld [vmem:[%s2 + $0x28] sm:$0xff]
  %v56 = vld [vmem:[%s2 + $0x30] sm:$0xff]
  %v57 = vld [vmem:[%s2 + $0x38] sm:$0xff]
  %v58 = vld [vmem:[%s2 + $0x40] sm:$0xff]
  %v59 = vld [vmem:[%s2 + $0x48] sm:$0xff]
  %v60 = vld [vmem:[%s2 + $0x50] sm:$0xff]
  %v61 = vld [vmem:[%s2 + $0x58] sm:$0xff]
  %v62 = vld [vmem:[%s2 + $0x60] sm:$0xff]
  %v63 = vld [vmem:[%s2 + $0x68] sm:$0xff]
  %v64 = vld [vmem:[%s2 + $0x70] sm:$0xff]
  %v65 = vld [vmem:[%s2 + $0x78] sm:$0xff]
  %v66 = vld [vmem:[%s2 + $0x80] sm:$0xff]
  %v67 = vld [vmem:[%s2 + $0x88] sm:$0xff]
  %v68 = vld [vmem:[%s2 + $0x90] sm:$0xff]
  %v69 = vld [vmem:[%s2 + $0x98] sm:$0xff]
  %v70 = vld [vmem:[%s2 + $0xa0] sm:$0xff]
  %v71 = vld [vmem:[%s2 + $0xa8] sm:$0xff]
  %v72 = vld [vmem:[%s2 + $0xb0] sm:$0xff]
  %v73 = vld [vmem:[%s2 + $0xb8] sm:$0xff]
  %v74 = vld [vmem:[%s2 + $0xc0] sm:$0xff]
  %v75 = vld [vmem:[%s2 + $0xc8] sm:$0xff]
  %v76 = vld [vmem:[%s2 + $0xd0] sm:$0xff]
  %v77 = vld [vmem:[%s2 + $0xd8] sm:$0xff]
  %v78 = vld [vmem:[%s2 + $0xe0] sm:$0xff]
  %v79 = vld [vmem:[%s2 + $0xe8] sm:$0xff]
  %v80 = vld [vmem:[%s2 + $0xf0] sm:$0xff]
  %v81 = vld [vmem:[%s2 + $0xf8] sm:$0xff]
  %v82 = vld [vmem:[%s2 + $0x100] sm:$0xff]
  %v83 = vld [vmem:[%s2 + $0x108] sm:$0xff]
  %v84 = vld [vmem:[%s2 + $0x110] sm:$0xff]
  %v85 = vld [vmem:[%s2 + $0x118] sm:$0xff]
  %v86 = vld [vmem:[%s2 + $0x120] sm:$0xff]
  %v87 = vld [vmem:[%s2 + $0x128] sm:$0xff]
  %v88 = vld [vmem:[%s2 + $0x130] sm:$0xff]
  %v89 = vld [vmem:[%s2 + $0x138] sm:$0xff]
  %v90 = vld [vmem:[%s2 + $0x140] sm:$0xff]
  %v91 = vld [vmem:[%s2 + $0x148] sm:$0xff]
  %v92 = vld [vmem:[%s2 + $0x150] sm:$0xff]
  %v93 = vld [vmem:[%s2 + $0x158] sm:$0xff]
  %v94 = vld [vmem:[%s2 + $0x160] sm:$0xff]
  %v95 = vld [vmem:[%s2 + $0x168] sm:$0xff]
  %v96 = vld [vmem:[%s2 + $0x170] sm:$0xff]
  %v97 = vld [vmem:[%s2 + $0x178] sm:$0xff]
  %v98 = vld [vmem:[%s2 + $0x180] sm:$0xff]
  %v99 = vld [vmem:[%s2 + $0x188] sm:$0xff]
  %v100 = vld [vmem:[%s2 + $0x190] sm:$0xff]
  %v101 = vld [vmem:[%s2 + $0x198] sm:$0xff]
  %v102 = vld [vmem:[%s2 + $0x1a0] sm:$0xff]
  %v103 = vld [vmem:[%s2 + $0x1a8] sm:$0xff]
  %v104 = vld [vmem:[%s2 + $0x1b0] sm:$0xff]
  %v105 = vld [vmem:[%s2 + $0x1b8] sm:$0xff]
  %v106 = vld [vmem:[%s2 + $0x1c0] sm:$0xff]
  %v107 = vld [vmem:[%s2 + $0x1c8] sm:$0xff]
  %v108 = vld [vmem:[%s2 + $0x1d0] sm:$0xff]
  %v109 = vld [vmem:[%s2 + $0x1d8] sm:$0xff]
  %v110 = vld [vmem:[%s2 + $0x1e0] sm:$0xff]
  %v111 = vld [vmem:[%s2 + $0x1e8] sm:$0xff]
  %v112 = vld [vmem:[%s2 + $0x1f0] sm:$0xff]
  %v113 = vld [vmem:[%s2 + $0x1f8] sm:$0xff]
  %v114 = vld [vmem:[%s2 + $0x200] sm:$0xff]
  %v115 = vld [vmem:[%s2 + $0x208] sm:$0xff]
  %v116 = vld [vmem:[%s2 + $0x210] sm:$0xff]
  %v117 = vld [vmem:[%s2 + $0x218] sm:$0xff]
  %v118 = vld [vmem:[%s2 + $0x220] sm:$0xff]
  %v119 = vld [vmem:[%s2 + $0x228] sm:$0xff]
  %v120 = vld [vmem:[%s2 + $0x230] sm:$0xff]
  %v121 = vld [vmem:[%s2 + $0x238] sm:$0xff]
  %v122 = vld [vmem:[%s2 + $0x240] sm:$0xff]
  %v123 = vld [vmem:[%s2 + $0x248] sm:$0xff]
  %v124 = vld [vmem:[%s2 + $0x250] sm:$0xff]
  %v125 = vld [vmem:[%s2 + $0x258] sm:$0xff]
  %v126 = vld [vmem:[%s2 + $0x260] sm:$0xff]
  %v127 = vld [vmem:[%s2 + $0x268] sm:$0xff]
  %v128 = vld [vmem:[%s2 + $0x270] sm:$0xff]
  %v129 = vld [vmem:[%s2 + $0x278] sm:$0xff]
  %v130 = vld [vmem:[%s2 + $0x280] sm:$0xff]
  %v131 = vld [vmem:[%s2 + $0x288] sm:$0xff]
  %v132 = vld [vmem:[%s2 + $0x290] sm:$0xff]
  %v133 = vld [vmem:[%s2 + $0x298] sm:$0xff]
  %v134 = vld [vmem:[%s2 + $0x2a0] sm:$0xff]
  %v135 = vld [vmem:[%s2 + $0x2a8] sm:$0xff]
  %v136 = vld [vmem:[%s2 + $0x2b0] sm:$0xff]
  %v137 = vld [vmem:[%s2 + $0x2b8] sm:$0xff]
  %v138 = vld [vmem:[%s2 + $0x2c0] sm:$0xff]
  %v139 = vld [vmem:[%s2 + $0x2c8] sm:$0xff]
  %v140 = vld [vmem:[%s2 + $0x2d0] sm:$0xff]
  %v141 = vld [vmem:[%s2 + $0x2d8] sm:$0xff]
  %v142 = vld [vmem:[%s2 + $0x2e0] sm:$0xff]
  %v143 = vld [vmem:[%s2 + $0x2e8] sm:$0xff]
  %v144 = vld [vmem:[%s2 + $0x2f0] sm:$0xff]
  %v145 = vld [vmem:[%s2 + $0x2f8] sm:$0xff]
  %v146 = vld [vmem:[%s5] sm:$0x3]
  %v148 = vlaneseq
  %v149 = vshrl.u32 %v148, 7
  %v150 = vsub.s32 0, %v149
  %v151 = vrot.slane %v146, %v150
  %v152 = vlaneseq
  %v153 = vshrl.u32 %v152, 7
  %v154 = vsub.s32 1, %v153
  %v155 = vrot.slane %v146, %v154
  %v182 = vunpack.c.l.b16 %v26
  %v183 = vunpack.c.h.b16 %v26
  %v184 = vunpack.c.l.b16 %v27
  %v185 = vunpack.c.h.b16 %v27
  %v186 = vunpack.c.l.b16 %v28
  %v187 = vunpack.c.h.b16 %v28
  %v188 = vunpack.c.l.b16 %v29
  %v189 = vunpack.c.h.b16 %v29
  %v190 = vunpack.c.l.b16 %v30
  %v191 = vunpack.c.h.b16 %v30
  %v192 = vunpack.c.l.b16 %v31
  %v193 = vunpack.c.h.b16 %v31
  %v194 = vunpack.c.l.b16 %v32
  %v195 = vunpack.c.h.b16 %v32
  %v196 = vunpack.c.l.b16 %v33
  %v197 = vunpack.c.h.b16 %v33
  %v198 = vunpack.c.l.b16 %v34
  %v199 = vunpack.c.h.b16 %v34
  %v200 = vunpack.c.l.b16 %v35
  %v201 = vunpack.c.h.b16 %v35
  %v202 = vunpack.c.l.b16 %v36
  %v203 = vunpack.c.h.b16 %v36
  %v204 = vunpack.c.l.b16 %v37
  %v205 = vunpack.c.h.b16 %v37
  %v206 = vunpack.c.l.b16 %v38
  %v207 = vunpack.c.h.b16 %v38
  %v208 = vunpack.c.l.b16 %v39
  %v209 = vunpack.c.h.b16 %v39
  %v210 = vunpack.c.l.b16 %v40
  %v211 = vunpack.c.h.b16 %v40
  %v212 = vunpack.c.l.b16 %v41
  %v213 = vunpack.c.h.b16 %v41
  %v214 = vunpack.c.l.b16 %v42
  %v215 = vunpack.c.h.b16 %v42
  %v216 = vunpack.c.l.b16 %v43
  %v217 = vunpack.c.h.b16 %v43
  %v218 = vunpack.c.l.b16 %v44
  %v219 = vunpack.c.h.b16 %v44
  %v220 = vunpack.c.l.b16 %v45
  %v221 = vunpack.c.h.b16 %v45
  %v222 = vunpack.c.l.b16 %v46
  %v223 = vunpack.c.h.b16 %v46
  %v224 = vunpack.c.l.b16 %v47
  %v225 = vunpack.c.h.b16 %v47
  %v226 = vunpack.c.l.b16 %v48
  %v227 = vunpack.c.h.b16 %v48
  %v228 = vunpack.c.l.b16 %v49
  %v229 = vunpack.c.h.b16 %v49
  %v230 = vpack.c.b16 %v188, %v182
  %v231 = vpack.c.b16 %v189, %v183
  %v232 = vpack.c.b16 %v190, %v184
  %v233 = vpack.c.b16 %v191, %v185
  %v234 = vpack.c.b16 %v192, %v186
  %v235 = vpack.c.b16 %v193, %v187
  %v236 = vpack.c.b16 %v200, %v194
  %v237 = vpack.c.b16 %v201, %v195
  %v238 = vpack.c.b16 %v202, %v196
  %v239 = vpack.c.b16 %v203, %v197
  %v240 = vpack.c.b16 %v204, %v198
  %v241 = vpack.c.b16 %v205, %v199
  %v242 = vpack.c.b16 %v212, %v206
  %v243 = vpack.c.b16 %v213, %v207
  %v244 = vpack.c.b16 %v214, %v208
  %v245 = vpack.c.b16 %v215, %v209
  %v246 = vpack.c.b16 %v216, %v210
  %v247 = vpack.c.b16 %v217, %v211
  %v248 = vpack.c.b16 %v224, %v218
  %v249 = vpack.c.b16 %v225, %v219
  %v250 = vpack.c.b16 %v226, %v220
  %v251 = vpack.c.b16 %v227, %v221
  %v252 = vpack.c.b16 %v228, %v222
  %v253 = vpack.c.b16 %v229, %v223
  %v374 = vunpack.c.l.b16 %v50
  %v375 = vunpack.c.h.b16 %v50
  %v376 = vunpack.c.l.b16 %v51
  %v377 = vunpack.c.h.b16 %v51
  %v378 = vunpack.c.l.b16 %v52
  %v379 = vunpack.c.h.b16 %v52
  %v380 = vunpack.c.l.b16 %v53
  %v381 = vunpack.c.h.b16 %v53
  %v382 = vunpack.c.l.b16 %v54
  %v383 = vunpack.c.h.b16 %v54
  %v384 = vunpack.c.l.b16 %v55
  %v385 = vunpack.c.h.b16 %v55
  %v386 = vunpack.c.l.b16 %v56
  %v387 = vunpack.c.h.b16 %v56
  %v388 = vunpack.c.l.b16 %v57
  %v389 = vunpack.c.h.b16 %v57
  %v390 = vunpack.c.l.b16 %v58
  %v391 = vunpack.c.h.b16 %v58
  %v392 = vunpack.c.l.b16 %v59
  %v393 = vunpack.c.h.b16 %v59
  %v394 = vunpack.c.l.b16 %v60
  %v395 = vunpack.c.h.b16 %v60
  %v396 = vunpack.c.l.b16 %v61
  %v397 = vunpack.c.h.b16 %v61
  %v398 = vunpack.c.l.b16 %v62
  %v399 = vunpack.c.h.b16 %v62
  %v400 = vunpack.c.l.b16 %v63
  %v401 = vunpack.c.h.b16 %v63
  %v402 = vunpack.c.l.b16 %v64
  %v403 = vunpack.c.h.b16 %v64
  %v404 = vunpack.c.l.b16 %v65
  %v405 = vunpack.c.h.b16 %v65
  %v406 = vunpack.c.l.b16 %v66
  %v407 = vunpack.c.h.b16 %v66
  %v408 = vunpack.c.l.b16 %v67
  %v409 = vunpack.c.h.b16 %v67
  %v410 = vunpack.c.l.b16 %v68
  %v411 = vunpack.c.h.b16 %v68
  %v412 = vunpack.c.l.b16 %v69
  %v413 = vunpack.c.h.b16 %v69
  %v414 = vunpack.c.l.b16 %v70
  %v415 = vunpack.c.h.b16 %v70
  %v416 = vunpack.c.l.b16 %v71
  %v417 = vunpack.c.h.b16 %v71
  %v418 = vunpack.c.l.b16 %v72
  %v419 = vunpack.c.h.b16 %v72
  %v420 = vunpack.c.l.b16 %v73
  %v421 = vunpack.c.h.b16 %v73
  %v422 = vunpack.c.l.b16 %v74
  %v423 = vunpack.c.h.b16 %v74
  %v424 = vunpack.c.l.b16 %v75
  %v425 = vunpack.c.h.b16 %v75
  %v426 = vunpack.c.l.b16 %v76
  %v427 = vunpack.c.h.b16 %v76
  %v428 = vunpack.c.l.b16 %v77
  %v429 = vunpack.c.h.b16 %v77
  %v430 = vunpack.c.l.b16 %v78
  %v431 = vunpack.c.h.b16 %v78
  %v432 = vunpack.c.l.b16 %v79
  %v433 = vunpack.c.h.b16 %v79
  %v434 = vunpack.c.l.b16 %v80
  %v435 = vunpack.c.h.b16 %v80
  %v436 = vunpack.c.l.b16 %v81
  %v437 = vunpack.c.h.b16 %v81
  %v438 = vunpack.c.l.b16 %v82
  %v439 = vunpack.c.h.b16 %v82
  %v440 = vunpack.c.l.b16 %v83
  %v441 = vunpack.c.h.b16 %v83
  %v442 = vunpack.c.l.b16 %v84
  %v443 = vunpack.c.h.b16 %v84
  %v444 = vunpack.c.l.b16 %v85
  %v445 = vunpack.c.h.b16 %v85
  %v446 = vunpack.c.l.b16 %v86
  %v447 = vunpack.c.h.b16 %v86
  %v448 = vunpack.c.l.b16 %v87
  %v449 = vunpack.c.h.b16 %v87
  %v450 = vunpack.c.l.b16 %v88
  %v451 = vunpack.c.h.b16 %v88
  %v452 = vunpack.c.l.b16 %v89
  %v453 = vunpack.c.h.b16 %v89
  %v454 = vunpack.c.l.b16 %v90
  %v455 = vunpack.c.h.b16 %v90
  %v456 = vunpack.c.l.b16 %v91
  %v457 = vunpack.c.h.b16 %v91
  %v458 = vunpack.c.l.b16 %v92
  %v459 = vunpack.c.h.b16 %v92
  %v460 = vunpack.c.l.b16 %v93
  %v461 = vunpack.c.h.b16 %v93
  %v462 = vunpack.c.l.b16 %v94
  %v463 = vunpack.c.h.b16 %v94
  %v464 = vunpack.c.l.b16 %v95
  %v465 = vunpack.c.h.b16 %v95
  %v466 = vunpack.c.l.b16 %v96
  %v467 = vunpack.c.h.b16 %v96
  %v468 = vunpack.c.l.b16 %v97
  %v469 = vunpack.c.h.b16 %v97
  %v470 = vunpack.c.l.b16 %v98
  %v471 = vunpack.c.h.b16 %v98
  %v472 = vunpack.c.l.b16 %v99
  %v473 = vunpack.c.h.b16 %v99
  %v474 = vunpack.c.l.b16 %v100
  %v475 = vunpack.c.h.b16 %v100
  %v476 = vunpack.c.l.b16 %v101
  %v477 = vunpack.c.h.b16 %v101
  %v478 = vunpack.c.l.b16 %v102
  %v479 = vunpack.c.h.b16 %v102
  %v480 = vunpack.c.l.b16 %v103
  %v481 = vunpack.c.h.b16 %v103
  %v482 = vunpack.c.l.b16 %v104
  %v483 = vunpack.c.h.b16 %v104
  %v484 = vunpack.c.l.b16 %v105
  %v485 = vunpack.c.h.b16 %v105
  %v486 = vunpack.c.l.b16 %v106
  %v487 = vunpack.c.h.b16 %v106
  %v488 = vunpack.c.l.b16 %v107
  %v489 = vunpack.c.h.b16 %v107
  %v490 = vunpack.c.l.b16 %v108
  %v491 = vunpack.c.h.b16 %v108
  %v492 = vunpack.c.l.b16 %v109
  %v493 = vunpack.c.h.b16 %v109
  %v494 = vunpack.c.l.b16 %v110
  %v495 = vunpack.c.h.b16 %v110
  %v496 = vunpack.c.l.b16 %v111
  %v497 = vunpack.c.h.b16 %v111
  %v498 = vunpack.c.l.b16 %v112
  %v499 = vunpack.c.h.b16 %v112
  %v500 = vunpack.c.l.b16 %v113
  %v501 = vunpack.c.h.b16 %v113
  %v502 = vunpack.c.l.b16 %v114
  %v503 = vunpack.c.h.b16 %v114
  %v504 = vunpack.c.l.b16 %v115
  %v505 = vunpack.c.h.b16 %v115
  %v506 = vunpack.c.l.b16 %v116
  %v507 = vunpack.c.h.b16 %v116
  %v508 = vunpack.c.l.b16 %v117
  %v509 = vunpack.c.h.b16 %v117
  %v510 = vunpack.c.l.b16 %v118
  %v511 = vunpack.c.h.b16 %v118
  %v512 = vunpack.c.l.b16 %v119
  %v513 = vunpack.c.h.b16 %v119
  %v514 = vunpack.c.l.b16 %v120
  %v515 = vunpack.c.h.b16 %v120
  %v516 = vunpack.c.l.b16 %v121
  %v517 = vunpack.c.h.b16 %v121
  %v518 = vunpack.c.l.b16 %v122
  %v519 = vunpack.c.h.b16 %v122
  %v520 = vunpack.c.l.b16 %v123
  %v521 = vunpack.c.h.b16 %v123
  %v522 = vunpack.c.l.b16 %v124
  %v523 = vunpack.c.h.b16 %v124
  %v524 = vunpack.c.l.b16 %v125
  %v525 = vunpack.c.h.b16 %v125
  %v526 = vunpack.c.l.b16 %v126
  %v527 = vunpack.c.h.b16 %v126
  %v528 = vunpack.c.l.b16 %v127
  %v529 = vunpack.c.h.b16 %v127
  %v530 = vunpack.c.l.b16 %v128
  %v531 = vunpack.c.h.b16 %v128
  %v532 = vunpack.c.l.b16 %v129
  %v533 = vunpack.c.h.b16 %v129
  %v534 = vunpack.c.l.b16 %v130
  %v535 = vunpack.c.h.b16 %v130
  %v536 = vunpack.c.l.b16 %v131
  %v537 = vunpack.c.h.b16 %v131
  %v538 = vunpack.c.l.b16 %v132
  %v539 = vunpack.c.h.b16 %v132
  %v540 = vunpack.c.l.b16 %v133
  %v541 = vunpack.c.h.b16 %v133
  %v542 = vunpack.c.l.b16 %v134
  %v543 = vunpack.c.h.b16 %v134
  %v544 = vunpack.c.l.b16 %v135
  %v545 = vunpack.c.h.b16 %v135
  %v546 = vunpack.c.l.b16 %v136
  %v547 = vunpack.c.h.b16 %v136
  %v548 = vunpack.c.l.b16 %v137
  %v549 = vunpack.c.h.b16 %v137
  %v550 = vunpack.c.l.b16 %v138
  %v551 = vunpack.c.h.b16 %v138
  %v552 = vunpack.c.l.b16 %v139
  %v553 = vunpack.c.h.b16 %v139
  %v554 = vunpack.c.l.b16 %v140
  %v555 = vunpack.c.h.b16 %v140
  %v556 = vunpack.c.l.b16 %v141
  %v557 = vunpack.c.h.b16 %v141
  %v558 = vunpack.c.l.b16 %v142
  %v559 = vunpack.c.h.b16 %v142
  %v560 = vunpack.c.l.b16 %v143
  %v561 = vunpack.c.h.b16 %v143
  %v562 = vunpack.c.l.b16 %v144
  %v563 = vunpack.c.h.b16 %v144
  %v564 = vunpack.c.l.b16 %v145
  %v565 = vunpack.c.h.b16 %v145
  %v566 = vpack.c.b16 %v376, %v374
  %v567 = vpack.c.b16 %v377, %v375
  %v568 = vpack.c.b16 %v380, %v378
  %v569 = vpack.c.b16 %v381, %v379
  %v570 = vpack.c.b16 %v384, %v382
  %v571 = vpack.c.b16 %v385, %v383
  %v572 = vpack.c.b16 %v388, %v386
  %v573 = vpack.c.b16 %v389, %v387
  %v574 = vpack.c.b16 %v392, %v390
  %v575 = vpack.c.b16 %v393, %v391
  %v576 = vpack.c.b16 %v396, %v394
  %v577 = vpack.c.b16 %v397, %v395
  %v578 = vpack.c.b16 %v400, %v398
  %v579 = vpack.c.b16 %v401, %v399
  %v580 = vpack.c.b16 %v404, %v402
  %v581 = vpack.c.b16 %v405, %v403
  %v582 = vpack.c.b16 %v408, %v406
  %v583 = vpack.c.b16 %v409, %v407
  %v584 = vpack.c.b16 %v412, %v410
  %v585 = vpack.c.b16 %v413, %v411
  %v586 = vpack.c.b16 %v416, %v414
  %v587 = vpack.c.b16 %v417, %v415
  %v588 = vpack.c.b16 %v420, %v418
  %v589 = vpack.c.b16 %v421, %v419
  %v590 = vpack.c.b16 %v424, %v422
  %v591 = vpack.c.b16 %v425, %v423
  %v592 = vpack.c.b16 %v428, %v426
  %v593 = vpack.c.b16 %v429, %v427
  %v594 = vpack.c.b16 %v432, %v430
  %v595 = vpack.c.b16 %v433, %v431
  %v596 = vpack.c.b16 %v436, %v434
  %v597 = vpack.c.b16 %v437, %v435
  %v598 = vpack.c.b16 %v440, %v438
  %v599 = vpack.c.b16 %v441, %v439
  %v600 = vpack.c.b16 %v444, %v442
  %v601 = vpack.c.b16 %v445, %v443
  %v602 = vpack.c.b16 %v448, %v446
  %v603 = vpack.c.b16 %v449, %v447
  %v604 = vpack.c.b16 %v452, %v450
  %v605 = vpack.c.b16 %v453, %v451
  %v606 = vpack.c.b16 %v456, %v454
  %v607 = vpack.c.b16 %v457, %v455
  %v608 = vpack.c.b16 %v460, %v458
  %v609 = vpack.c.b16 %v461, %v459
  %v610 = vpack.c.b16 %v464, %v462
  %v611 = vpack.c.b16 %v465, %v463
  %v612 = vpack.c.b16 %v468, %v466
  %v613 = vpack.c.b16 %v469, %v467
  %v614 = vpack.c.b16 %v472, %v470
  %v615 = vpack.c.b16 %v473, %v471
  %v616 = vpack.c.b16 %v476, %v474
  %v617 = vpack.c.b16 %v477, %v475
  %v618 = vpack.c.b16 %v480, %v478
  %v619 = vpack.c.b16 %v481, %v479
  %v620 = vpack.c.b16 %v484, %v482
  %v621 = vpack.c.b16 %v485, %v483
  %v622 = vpack.c.b16 %v488, %v486
  %v623 = vpack.c.b16 %v489, %v487
  %v624 = vpack.c.b16 %v492, %v490
  %v625 = vpack.c.b16 %v493, %v491
  %v626 = vpack.c.b16 %v496, %v494
  %v627 = vpack.c.b16 %v497, %v495
  %v628 = vpack.c.b16 %v500, %v498
  %v629 = vpack.c.b16 %v501, %v499
  %v630 = vpack.c.b16 %v504, %v502
  %v631 = vpack.c.b16 %v505, %v503
  %v632 = vpack.c.b16 %v508, %v506
  %v633 = vpack.c.b16 %v509, %v507
  %v634 = vpack.c.b16 %v512, %v510
  %v635 = vpack.c.b16 %v513, %v511
  %v636 = vpack.c.b16 %v516, %v514
  %v637 = vpack.c.b16 %v517, %v515
  %v638 = vpack.c.b16 %v520, %v518
  %v639 = vpack.c.b16 %v521, %v519
  %v640 = vpack.c.b16 %v524, %v522
  %v641 = vpack.c.b16 %v525, %v523
  %v642 = vpack.c.b16 %v528, %v526
  %v643 = vpack.c.b16 %v529, %v527
  %v644 = vpack.c.b16 %v532, %v530
  %v645 = vpack.c.b16 %v533, %v531
  %v646 = vpack.c.b16 %v536, %v534
  %v647 = vpack.c.b16 %v537, %v535
  %v648 = vpack.c.b16 %v540, %v538
  %v649 = vpack.c.b16 %v541, %v539
  %v650 = vpack.c.b16 %v544, %v542
  %v651 = vpack.c.b16 %v545, %v543
  %v652 = vpack.c.b16 %v548, %v546
  %v653 = vpack.c.b16 %v549, %v547
  %v654 = vpack.c.b16 %v552, %v550
  %v655 = vpack.c.b16 %v553, %v551
  %v656 = vpack.c.b16 %v556, %v554
  %v657 = vpack.c.b16 %v557, %v555
  %v658 = vpack.c.b16 %v560, %v558
  %v659 = vpack.c.b16 %v561, %v559
  %v660 = vpack.c.b16 %v564, %v562
  %v661 = vpack.c.b16 %v565, %v563
  %758 = vmatprep.subr.bf16.mxu0 %v567
  %759 = vmatpush1.bf16.msra.mxu0 %v566
  %760 = vmatprep.subr.bf16.mxu0 %v569
  %761 = vmatpush1.bf16.msra.mxu0 %v568
  %762 = vmatprep.subr.bf16.mxu0 %v571
  %763 = vmatpush1.bf16.msra.mxu0 %v570
  %764 = vmatprep.subr.bf16.mxu0 %v573
  %765 = vmatpush1.bf16.msra.mxu0 %v572
  %766 = vmatprep.subr.bf16.mxu0 %v575
  %767 = vmatpush1.bf16.msra.mxu0 %v574
  %768 = vmatprep.subr.bf16.mxu0 %v577
  %769 = vmatpush1.bf16.msra.mxu0 %v576
  %770 = vmatprep.subr.bf16.mxu0 %v579
  %771 = vmatpush1.bf16.msra.mxu0 %v578
  %772 = vmatprep.subr.bf16.mxu0 %v581
  %773 = vmatpush1.bf16.msra.mxu0 %v580
  %774 = vmatprep.subr.bf16.mxu0 %v583
  %775 = vmatpush1.bf16.msra.mxu0 %v582
  %776 = vmatprep.subr.bf16.mxu0 %v585
  %777 = vmatpush1.bf16.msra.mxu0 %v584
  %778 = vmatprep.subr.bf16.mxu0 %v587
  %779 = vmatpush1.bf16.msra.mxu0 %v586
  %780 = vmatprep.subr.bf16.mxu0 %v589
  %781 = vmatpush1.bf16.msra.mxu0 %v588
  %782 = vmatprep.subr.bf16.mxu0 %v591
  %783 = vmatpush1.bf16.msra.mxu0 %v590
  %784 = vmatprep.subr.bf16.mxu0 %v593
  %785 = vmatpush1.bf16.msra.mxu0 %v592
  %786 = vmatprep.subr.bf16.mxu0 %v595
  %787 = vmatpush1.bf16.msra.mxu0 %v594
  %788 = vmatprep.subr.bf16.mxu0 %v597
  %789 = vmatpush1.bf16.msra.mxu0 %v596
  %790 = vmatprep.mubr.bf16.mxu0 %v231
  %791 = vmatmul.mubr.bf16.gmra.mrb[0].mxu0 %v230
  %v792 = vpop.f32.mrb[0].mxu0
  %v793 = vadd.f32 %v151, %v792
  %v794 = vpop.f32.mrb[0].mxu0
  %v795 = vadd.f32 %v155, %v794
  %v796 = vpop.f32.mrb[0].mxu0
  %v797 = vadd.f32 %v151, %v796
  %v798 = vpop.f32.mrb[0].mxu0
  %v799 = vadd.f32 %v155, %v798
  %800 = vmatprep.mubr.bf16.mxu0 %v237
  %801 = vmatmul.mubr.bf16.gmra.mrb[0].mxu0 %v236
  %v802 = vpop.f32.mrb[0].mxu0
  %v803 = vadd.f32 %v151, %v802
  %v804 = vpop.f32.mrb[0].mxu0
  %v805 = vadd.f32 %v155, %v804
  %v806 = vpop.f32.mrb[0].mxu0
  %v807 = vadd.f32 %v151, %v806
  %v808 = vpop.f32.mrb[0].mxu0
  %v809 = vadd.f32 %v155, %v808
  %810 = vmatprep.mubr.bf16.mxu0 %v243
  %811 = vmatmul.mubr.bf16.gmra.mrb[0].mxu0 %v242
  %v812 = vpop.f32.mrb[0].mxu0
  %v813 = vadd.f32 %v151, %v812
  %v814 = vpop.f32.mrb[0].mxu0
  %v815 = vadd.f32 %v155, %v814
  %v816 = vpop.f32.mrb[0].mxu0
  %v817 = vadd.f32 %v151, %v816
  %v818 = vpop.f32.mrb[0].mxu0
  %v819 = vadd.f32 %v155, %v818
  %820 = vmatprep.mubr.bf16.mxu0 %v249
  %821 = vmatmul.mubr.bf16.gmra.mrb[0].mxu0 %v248
  %v822 = vpop.f32.mrb[0].mxu0
  %v823 = vadd.f32 %v151, %v822
  %v824 = vpop.f32.mrb[0].mxu0
  %v825 = vadd.f32 %v155, %v824
  %v826 = vpop.f32.mrb[0].mxu0
  %v827 = vadd.f32 %v151, %v826
  %v828 = vpop.f32.mrb[0].mxu0
  %v829 = vadd.f32 %v155, %v828
  %830 = vdwg.mxu0
  %831 = vmatprep.subr.bf16.mxu0 %v599
  %832 = vmatpush1.bf16.msra.mxu0 %v598
  %833 = vmatprep.subr.bf16.mxu0 %v601
  %834 = vmatpush1.bf16.msra.mxu0 %v600
  %835 = vmatprep.subr.bf16.mxu0 %v603
  %836 = vmatpush1.bf16.msra.mxu0 %v602
  %837 = vmatprep.subr.bf16.mxu0 %v605
  %838 = vmatpush1.bf16.msra.mxu0 %v604
  %839 = vmatprep.subr.bf16.mxu0 %v607
  %840 = vmatpush1.bf16.msra.mxu0 %v606
  %841 = vmatprep.subr.bf16.mxu0 %v609
  %842 = vmatpush1.bf16.msra.mxu0 %v608
  %843 = vmatprep.subr.bf16.mxu0 %v611
  %844 = vmatpush1.bf16.msra.mxu0 %v610
  %845 = vmatprep.subr.bf16.mxu0 %v613
  %846 = vmatpush1.bf16.msra.mxu0 %v612
  %847 = vmatprep.subr.bf16.mxu0 %v615
  %848 = vmatpush1.bf16.msra.mxu0 %v614
  %849 = vmatprep.subr.bf16.mxu0 %v617
  %850 = vmatpush1.bf16.msra.mxu0 %v616
  %851 = vmatprep.subr.bf16.mxu0 %v619
  %852 = vmatpush1.bf16.msra.mxu0 %v618
  %853 = vmatprep.subr.bf16.mxu0 %v621
  %854 = vmatpush1.bf16.msra.mxu0 %v620
  %855 = vmatprep.subr.bf16.mxu0 %v623
  %856 = vmatpush1.bf16.msra.mxu0 %v622
  %857 = vmatprep.subr.bf16.mxu0 %v625
  %858 = vmatpush1.bf16.msra.mxu0 %v624
  %859 = vmatprep.subr.bf16.mxu0 %v627
  %860 = vmatpush1.bf16.msra.mxu0 %v626
  %861 = vmatprep.subr.bf16.mxu0 %v629
  %862 = vmatpush1.bf16.msra.mxu0 %v628
  %863 = vmatprep.mubr.bf16.mxu0 %v233
  %864 = vmatmul.mubr.bf16.gmra.mrb[0].mxu0 %v232
  %v865 = vpop.f32.mrb[0].mxu0
  %v866 = vadd.f32 %v793, %v865
  %v867 = vpop.f32.mrb[0].mxu0
  %v868 = vadd.f32 %v795, %v867
  %v869 = vpop.f32.mrb[0].mxu0
  %v870 = vadd.f32 %v797, %v869
  %v871 = vpop.f32.mrb[0].mxu0
  %v872 = vadd.f32 %v799, %v871
  %873 = vmatprep.mubr.bf16.mxu0 %v239
  %874 = vmatmul.mubr.bf16.gmra.mrb[0].mxu0 %v238
  %v875 = vpop.f32.mrb[0].mxu0
  %v876 = vadd.f32 %v803, %v875
  %v877 = vpop.f32.mrb[0].mxu0
  %v878 = vadd.f32 %v805, %v877
  %v879 = vpop.f32.mrb[0].mxu0
  %v880 = vadd.f32 %v807, %v879
  %v881 = vpop.f32.mrb[0].mxu0
  %v882 = vadd.f32 %v809, %v881
  %883 = vmatprep.mubr.bf16.mxu0 %v245
  %884 = vmatmul.mubr.bf16.gmra.mrb[0].mxu0 %v244
  %v885 = vpop.f32.mrb[0].mxu0
  %v886 = vadd.f32 %v813, %v885
  %v887 = vpop.f32.mrb[0].mxu0
  %v888 = vadd.f32 %v815, %v887
  %v889 = vpop.f32.mrb[0].mxu0
  %v890 = vadd.f32 %v817, %v889
  %v891 = vpop.f32.mrb[0].mxu0
  %v892 = vadd.f32 %v819, %v891
  %893 = vmatprep.mubr.bf16.mxu0 %v251
  %894 = vmatmul.mubr.bf16.gmra.mrb[0].mxu0 %v250
  %v895 = vpop.f32.mrb[0].mxu0
  %v896 = vadd.f32 %v823, %v895
  %v897 = vpop.f32.mrb[0].mxu0
  %v898 = vadd.f32 %v825, %v897
  %v899 = vpop.f32.mrb[0].mxu0
  %v900 = vadd.f32 %v827, %v899
  %v901 = vpop.f32.mrb[0].mxu0
  %v902 = vadd.f32 %v829, %v901
  %903 = vdwg.mxu0
  %904 = vmatprep.subr.bf16.mxu0 %v631
  %905 = vmatpush1.bf16.msra.mxu0 %v630
  %906 = vmatprep.subr.bf16.mxu0 %v633
  %907 = vmatpush1.bf16.msra.mxu0 %v632
  %908 = vmatprep.subr.bf16.mxu0 %v635
  %909 = vmatpush1.bf16.msra.mxu0 %v634
  %910 = vmatprep.subr.bf16.mxu0 %v637
  %911 = vmatpush1.bf16.msra.mxu0 %v636
  %912 = vmatprep.subr.bf16.mxu0 %v639
  %913 = vmatpush1.bf16.msra.mxu0 %v638
  %914 = vmatprep.subr.bf16.mxu0 %v641
  %915 = vmatpush1.bf16.msra.mxu0 %v640
  %916 = vmatprep.subr.bf16.mxu0 %v643
  %917 = vmatpush1.bf16.msra.mxu0 %v642
  %918 = vmatprep.subr.bf16.mxu0 %v645
  %919 = vmatpush1.bf16.msra.mxu0 %v644
  %920 = vmatprep.subr.bf16.mxu0 %v647
  %921 = vmatpush1.bf16.msra.mxu0 %v646
  %922 = vmatprep.subr.bf16.mxu0 %v649
  %923 = vmatpush1.bf16.msra.mxu0 %v648
  %924 = vmatprep.subr.bf16.mxu0 %v651
  %925 = vmatpush1.bf16.msra.mxu0 %v650
  %926 = vmatprep.subr.bf16.mxu0 %v653
  %927 = vmatpush1.bf16.msra.mxu0 %v652
  %928 = vmatprep.subr.bf16.mxu0 %v655
  %929 = vmatpush1.bf16.msra.mxu0 %v654
  %930 = vmatprep.subr.bf16.mxu0 %v657
  %931 = vmatpush1.bf16.msra.mxu0 %v656
  %932 = vmatprep.subr.bf16.mxu0 %v659
  %933 = vmatpush1.bf16.msra.mxu0 %v658
  %934 = vmatprep.subr.bf16.mxu0 %v661
  %935 = vmatpush1.bf16.msra.mxu0 %v660
  %936 = vmatprep.mubr.bf16.mxu0 %v235
  %937 = vmatmul.mubr.bf16.gmra.mrb[0].mxu0 %v234
  %v938 = vpop.f32.mrb[0].mxu0
  %v939 = vadd.f32 %v866, %v938
  %v940 = vpop.f32.mrb[0].mxu0
  %v941 = vadd.f32 %v868, %v940
  %v942 = vpop.f32.mrb[0].mxu0
  %v943 = vadd.f32 %v870, %v942
  %v944 = vpop.f32.mrb[0].mxu0
  %v945 = vadd.f32 %v872, %v944
  %946 = vmatprep.mubr.bf16.mxu0 %v241
  %947 = vmatmul.mubr.bf16.gmra.mrb[0].mxu0 %v240
  %v948 = vpop.f32.mrb[0].mxu0
  %v949 = vadd.f32 %v876, %v948
  %v950 = vpop.f32.mrb[0].mxu0
  %v951 = vadd.f32 %v878, %v950
  %v952 = vpop.f32.mrb[0].mxu0
  %v953 = vadd.f32 %v880, %v952
  %v954 = vpop.f32.mrb[0].mxu0
  %v955 = vadd.f32 %v882, %v954
  %956 = vmatprep.mubr.bf16.mxu0 %v247
  %957 = vmatmul.mubr.bf16.gmra.mrb[0].mxu0 %v246
  %v958 = vpop.f32.mrb[0].mxu0
  %v959 = vadd.f32 %v886, %v958
  %v960 = vpop.f32.mrb[0].mxu0
  %v961 = vadd.f32 %v888, %v960
  %v962 = vpop.f32.mrb[0].mxu0
  %v963 = vadd.f32 %v890, %v962
  %v964 = vpop.f32.mrb[0].mxu0
  %v965 = vadd.f32 %v892, %v964
  %966 = vmatprep.mubr.bf16.mxu0 %v253
  %967 = vmatmul.mubr.bf16.gmra.mrb[0].mxu0 %v252
  %v968 = vpop.f32.mrb[0].mxu0
  %v969 = vadd.f32 %v896, %v968
  %v970 = vpop.f32.mrb[0].mxu0
  %v971 = vadd.f32 %v898, %v970
  %v972 = vpop.f32.mrb[0].mxu0
  %v973 = vadd.f32 %v900, %v972
  %v974 = vpop.f32.mrb[0].mxu0
  %v975 = vadd.f32 %v902, %v974
  %976 = vdwg.mxu0
  %v977 = vld [vmem:[%s1] sm:$0xff]
  %978 = vst [vmem:[#allocation2] sm:$0xff] %v977
  %v979 = vpack.c.bf16 %v977, %v977
  %v980 = vld [vmem:[%s3] sm:$0xf]
  %v981 = vld [vmem:[%s3 + $0x4] sm:$0xf]
  %v982 = vld [vmem:[%s3 + $0x8] sm:$0xf]
  %v983 = vld [vmem:[%s3 + $0xc] sm:$0xf]
  %v984 = vld [vmem:[%s3 + $0x10] sm:$0xf]
  %v985 = vld [vmem:[%s3 + $0x14] sm:$0xf]
  %v986 = vld [vmem:[%s3 + $0x18] sm:$0xf]
  %v987 = vld [vmem:[%s3 + $0x1c] sm:$0xf]
  %v988 = vld [vmem:[%s3 + $0x20] sm:$0xf]
  %v989 = vld [vmem:[%s3 + $0x24] sm:$0xf]
  %v990 = vld [vmem:[%s3 + $0x28] sm:$0xf]
  %v991 = vld [vmem:[%s3 + $0x2c] sm:$0xf]
  %v992 = vld [vmem:[%s3 + $0x30] sm:$0xf]
  %v993 = vld [vmem:[%s3 + $0x34] sm:$0xf]
  %v994 = vld [vmem:[%s3 + $0x38] sm:$0xf]
  %v995 = vld [vmem:[%s3 + $0x3c] sm:$0xf]
  %v1012 = vunpack.c.l.b16 %v980
  %v1013 = vunpack.c.l.b16 %v981
  %v1014 = vunpack.c.l.b16 %v982
  %v1015 = vunpack.c.l.b16 %v983
  %v1016 = vunpack.c.l.b16 %v984
  %v1017 = vunpack.c.l.b16 %v985
  %v1018 = vunpack.c.l.b16 %v986
  %v1019 = vunpack.c.l.b16 %v987
  %v1020 = vunpack.c.l.b16 %v988
  %v1021 = vunpack.c.l.b16 %v989
  %v1022 = vunpack.c.l.b16 %v990
  %v1023 = vunpack.c.l.b16 %v991
  %v1024 = vunpack.c.l.b16 %v992
  %v1025 = vunpack.c.l.b16 %v993
  %v1026 = vunpack.c.l.b16 %v994
  %v1027 = vunpack.c.l.b16 %v995
  %v1028 = vpack.c.b16 %v1013, %v1012
  %v1029 = vpack.c.b16 %v1015, %v1014
  %v1030 = vpack.c.b16 %v1017, %v1016
  %v1031 = vpack.c.b16 %v1019, %v1018
  %v1032 = vpack.c.b16 %v1021, %v1020
  %v1033 = vpack.c.b16 %v1023, %v1022
  %v1034 = vpack.c.b16 %v1025, %v1024
  %v1035 = vpack.c.b16 %v1027, %v1026
  %1044 = vmatprep.subr.bf16.mxu0 0
  %1045 = vmatpush1.bf16.msra.mxu0 %v1028
  %1046 = vmatprep.subr.bf16.mxu0 0
  %1047 = vmatpush1.bf16.msra.mxu0 %v1029
  %1048 = vmatprep.subr.bf16.mxu0 0
  %1049 = vmatpush1.bf16.msra.mxu0 %v1030
  %1050 = vmatprep.subr.bf16.mxu0 0
  %1051 = vmatpush1.bf16.msra.mxu0 %v1031
  %1052 = vmatprep.subr.bf16.mxu0 0
  %1053 = vmatpush1.bf16.msra.mxu0 %v1032
  %1054 = vmatprep.subr.bf16.mxu0 0
  %1055 = vmatpush1.bf16.msra.mxu0 %v1033
  %1056 = vmatprep.subr.bf16.mxu0 0
  %1057 = vmatpush1.bf16.msra.mxu0 %v1034
  %1058 = vmatprep.subr.bf16.mxu0 0
  %1059 = vmatpush1.bf16.msra.mxu0 %v1035
  %1060 = vmatprep.subr.bf16.mxu0 0
  %1061 = vmatpush1.bf16.msra.mxu0 0
  %1062 = vmatprep.subr.bf16.mxu0 0
  %1063 = vmatpush1.bf16.msra.mxu0 0
  %1064 = vmatprep.subr.bf16.mxu0 0
  %1065 = vmatpush1.bf16.msra.mxu0 0
  %1066 = vmatprep.subr.bf16.mxu0 0
  %1067 = vmatpush1.bf16.msra.mxu0 0
  %1068 = vmatprep.subr.bf16.mxu0 0
  %1069 = vmatpush1.bf16.msra.mxu0 0
  %1070 = vmatprep.subr.bf16.mxu0 0
  %1071 = vmatpush1.bf16.msra.mxu0 0
  %1072 = vmatprep.subr.bf16.mxu0 0
  %1073 = vmatpush1.bf16.msra.mxu0 0
  %1074 = vmatprep.subr.bf16.mxu0 0
  %1075 = vmatpush1.bf16.msra.mxu0 0
  %1076 = vmatprep.mubr.bf16.mxu0 0
  %1077 = vmatmul.mubr.bf16.gmra.mrb[0].mxu0 %v979
  %v1078 = vpop.f32.mrb[0].mxu0
  %v1079 = vadd.f32 0.0, %v1078
  %v1080 = vpop.f32.mrb[0].mxu0
  %v1081 = vpop.f32.mrb[0].mxu0
  %v1082 = vpop.f32.mrb[0].mxu0
  %1083 = vdwg.mxu0
  %v1084 = vadd.f32 %v939, %v1079
  %1085 = vst [vmem:[#allocation2 + $0x8] sm:$0xff] %v1084
  %v1086 = vpack.c.bf16 %v1084, %v1084
  %v1087 = vld [vmem:[%s3] sm:$0xf]
  %v1088 = vld [vmem:[%s3 + $0x4] sm:$0xf]
  %v1089 = vld [vmem:[%s3 + $0x8] sm:$0xf]
  %v1090 = vld [vmem:[%s3 + $0xc] sm:$0xf]
  %v1091 = vld [vmem:[%s3 + $0x10] sm:$0xf]
  %v1092 = vld [vmem:[%s3 + $0x14] sm:$0xf]
  %v1093 = vld [vmem:[%s3 + $0x18] sm:$0xf]
  %v1094 = vld [vmem:[%s3 + $0x1c] sm:$0xf]
  %v1095 = vld [vmem:[%s3 + $0x20] sm:$0xf]
  %v1096 = vld [vmem:[%s3 + $0x24] sm:$0xf]
  %v1097 = vld [vmem:[%s3 + $0x28] sm:$0xf]
  %v1098 = vld [vmem:[%s3 + $0x2c] sm:$0xf]
  %v1099 = vld [vmem:[%s3 + $0x30] sm:$0xf]
  %v1100 = vld [vmem:[%s3 + $0x34] sm:$0xf]
  %v1101 = vld [vmem:[%s3 + $0x38] sm:$0xf]
  %v1102 = vld [vmem:[%s3 + $0x3c] sm:$0xf]
  %v1119 = vunpack.c.l.b16 %v1087
  %v1120 = vunpack.c.l.b16 %v1088
  %v1121 = vunpack.c.l.b16 %v1089
  %v1122 = vunpack.c.l.b16 %v1090
  %v1123 = vunpack.c.l.b16 %v1091
  %v1124 = vunpack.c.l.b16 %v1092
  %v1125 = vunpack.c.l.b16 %v1093
  %v1126 = vunpack.c.l.b16 %v1094
  %v1127 = vunpack.c.l.b16 %v1095
  %v1128 = vunpack.c.l.b16 %v1096
  %v1129 = vunpack.c.l.b16 %v1097
  %v1130 = vunpack.c.l.b16 %v1098
  %v1131 = vunpack.c.l.b16 %v1099
  %v1132 = vunpack.c.l.b16 %v1100
  %v1133 = vunpack.c.l.b16 %v1101
  %v1134 = vunpack.c.l.b16 %v1102
  %v1135 = vpack.c.b16 %v1120, %v1119
  %v1136 = vpack.c.b16 %v1122, %v1121
  %v1137 = vpack.c.b16 %v1124, %v1123
  %v1138 = vpack.c.b16 %v1126, %v1125
  %v1139 = vpack.c.b16 %v1128, %v1127
  %v1140 = vpack.c.b16 %v1130, %v1129
  %v1141 = vpack.c.b16 %v1132, %v1131
  %v1142 = vpack.c.b16 %v1134, %v1133
  %1151 = vmatprep.subr.bf16.mxu0 0
  %1152 = vmatpush1.bf16.msra.mxu0 %v1135
  %1153 = vmatprep.subr.bf16.mxu0 0
  %1154 = vmatpush1.bf16.msra.mxu0 %v1136
  %1155 = vmatprep.subr.bf16.mxu0 0
  %1156 = vmatpush1.bf16.msra.mxu0 %v1137
  %1157 = vmatprep.subr.bf16.mxu0 0
  %1158 = vmatpush1.bf16.msra.mxu0 %v1138
  %1159 = vmatprep.subr.bf16.mxu0 0
  %1160 = vmatpush1.bf16.msra.mxu0 %v1139
  %1161 = vmatprep.subr.bf16.mxu0 0
  %1162 = vmatpush1.bf16.msra.mxu0 %v1140
  %1163 = vmatprep.subr.bf16.mxu0 0
  %1164 = vmatpush1.bf16.msra.mxu0 %v1141
  %1165 = vmatprep.subr.bf16.mxu0 0
  %1166 = vmatpush1.bf16.msra.mxu0 %v1142
  %1167 = vmatprep.subr.bf16.mxu0 0
  %1168 = vmatpush1.bf16.msra.mxu0 0
  %1169 = vmatprep.subr.bf16.mxu0 0
  %1170 = vmatpush1.bf16.msra.mxu0 0
  %1171 = vmatprep.subr.bf16.mxu0 0
  %1172 = vmatpush1.bf16.msra.mxu0 0
  %1173 = vmatprep.subr.bf16.mxu0 0
  %1174 = vmatpush1.bf16.msra.mxu0 0
  %1175 = vmatprep.subr.bf16.mxu0 0
  %1176 = vmatpush1.bf16.msra.mxu0 0
  %1177 = vmatprep.subr.bf16.mxu0 0
  %1178 = vmatpush1.bf16.msra.mxu0 0
  %1179 = vmatprep.subr.bf16.mxu0 0
  %1180 = vmatpush1.bf16.msra.mxu0 0
  %1181 = vmatprep.subr.bf16.mxu0 0
  %1182 = vmatpush1.bf16.msra.mxu0 0
  %1183 = vmatprep.mubr.bf16.mxu0 0
  %1184 = vmatmul.mubr.bf16.gmra.mrb[0].mxu0 %v1086
  %v1185 = vpop.f32.mrb[0].mxu0
  %v1186 = vadd.f32 0.0, %v1185
  %v1187 = vpop.f32.mrb[0].mxu0
  %v1188 = vpop.f32.mrb[0].mxu0
  %v1189 = vpop.f32.mrb[0].mxu0
  %1190 = vdwg.mxu0
  %v1191 = vadd.f32 %v943, %v1186
  %1192 = vst [vmem:[#allocation2 + $0x10] sm:$0xff] %v1191
  %v1193 = vpack.c.bf16 %v1191, %v1191
  %v1194 = vld [vmem:[%s3] sm:$0xf]
  %v1195 = vld [vmem:[%s3 + $0x4] sm:$0xf]
  %v1196 = vld [vmem:[%s3 + $0x8] sm:$0xf]
  %v1197 = vld [vmem:[%s3 + $0xc] sm:$0xf]
  %v1198 = vld [vmem:[%s3 + $0x10] sm:$0xf]
  %v1199 = vld [vmem:[%s3 + $0x14] sm:$0xf]
  %v1200 = vld [vmem:[%s3 + $0x18] sm:$0xf]
  %v1201 = vld [vmem:[%s3 + $0x1c] sm:$0xf]
  %v1202 = vld [vmem:[%s3 + $0x20] sm:$0xf]
  %v1203 = vld [vmem:[%s3 + $0x24] sm:$0xf]
  %v1204 = vld [vmem:[%s3 + $0x28] sm:$0xf]
  %v1205 = vld [vmem:[%s3 + $0x2c] sm:$0xf]
  %v1206 = vld [vmem:[%s3 + $0x30] sm:$0xf]
  %v1207 = vld [vmem:[%s3 + $0x34] sm:$0xf]
  %v1208 = vld [vmem:[%s3 + $0x38] sm:$0xf]
  %v1209 = vld [vmem:[%s3 + $0x3c] sm:$0xf]
  %v1226 = vunpack.c.l.b16 %v1194
  %v1227 = vunpack.c.l.b16 %v1195
  %v1228 = vunpack.c.l.b16 %v1196
  %v1229 = vunpack.c.l.b16 %v1197
  %v1230 = vunpack.c.l.b16 %v1198
  %v1231 = vunpack.c.l.b16 %v1199
  %v1232 = vunpack.c.l.b16 %v1200
  %v1233 = vunpack.c.l.b16 %v1201
  %v1234 = vunpack.c.l.b16 %v1202
  %v1235 = vunpack.c.l.b16 %v1203
  %v1236 = vunpack.c.l.b16 %v1204
  %v1237 = vunpack.c.l.b16 %v1205
  %v1238 = vunpack.c.l.b16 %v1206
  %v1239 = vunpack.c.l.b16 %v1207
  %v1240 = vunpack.c.l.b16 %v1208
  %v1241 = vunpack.c.l.b16 %v1209
  %v1242 = vpack.c.b16 %v1227, %v1226
  %v1243 = vpack.c.b16 %v1229, %v1228
  %v1244 = vpack.c.b16 %v1231, %v1230
  %v1245 = vpack.c.b16 %v1233, %v1232
  %v1246 = vpack.c.b16 %v1235, %v1234
  %v1247 = vpack.c.b16 %v1237, %v1236
  %v1248 = vpack.c.b16 %v1239, %v1238
  %v1249 = vpack.c.b16 %v1241, %v1240
  %1258 = vmatprep.subr.bf16.mxu0 0
  %1259 = vmatpush1.bf16.msra.mxu0 %v1242
  %1260 = vmatprep.subr.bf16.mxu0 0
  %1261 = vmatpush1.bf16.msra.mxu0 %v1243
  %1262 = vmatprep.subr.bf16.mxu0 0
  %1263 = vmatpush1.bf16.msra.mxu0 %v1244
  %1264 = vmatprep.subr.bf16.mxu0 0
  %1265 = vmatpush1.bf16.msra.mxu0 %v1245
  %1266 = vmatprep.subr.bf16.mxu0 0
  %1267 = vmatpush1.bf16.msra.mxu0 %v1246
  %1268 = vmatprep.subr.bf16.mxu0 0
  %1269 = vmatpush1.bf16.msra.mxu0 %v1247
  %1270 = vmatprep.subr.bf16.mxu0 0
  %1271 = vmatpush1.bf16.msra.mxu0 %v1248
  %1272 = vmatprep.subr.bf16.mxu0 0
  %1273 = vmatpush1.bf16.msra.mxu0 %v1249
  %1274 = vmatprep.subr.bf16.mxu0 0
  %1275 = vmatpush1.bf16.msra.mxu0 0
  %1276 = vmatprep.subr.bf16.mxu0 0
  %1277 = vmatpush1.bf16.msra.mxu0 0
  %1278 = vmatprep.subr.bf16.mxu0 0
  %1279 = vmatpush1.bf16.msra.mxu0 0
  %1280 = vmatprep.subr.bf16.mxu0 0
  %1281 = vmatpush1.bf16.msra.mxu0 0
  %1282 = vmatprep.subr.bf16.mxu0 0
  %1283 = vmatpush1.bf16.msra.mxu0 0
  %1284 = vmatprep.subr.bf16.mxu0 0
  %1285 = vmatpush1.bf16.msra.mxu0 0
  %1286 = vmatprep.subr.bf16.mxu0 0
  %1287 = vmatpush1.bf16.msra.mxu0 0
  %1288 = vmatprep.subr.bf16.mxu0 0
  %1289 = vmatpush1.bf16.msra.mxu0 0
  %1290 = vmatprep.mubr.bf16.mxu0 0
  %1291 = vmatmul.mubr.bf16.gmra.mrb[0].mxu0 %v1193
  %v1292 = vpop.f32.mrb[0].mxu0
  %v1293 = vadd.f32 0.0, %v1292
  %v1294 = vpop.f32.mrb[0].mxu0
  %v1295 = vpop.f32.mrb[0].mxu0
  %v1296 = vpop.f32.mrb[0].mxu0
  %1297 = vdwg.mxu0
  %v1298 = vadd.f32 %v949, %v1293
  %1299 = vst [vmem:[#allocation2 + $0x18] sm:$0xff] %v1298
  %v1300 = vpack.c.bf16 %v1298, %v1298
  %v1301 = vld [vmem:[%s3] sm:$0xf]
  %v1302 = vld [vmem:[%s3 + $0x4] sm:$0xf]
  %v1303 = vld [vmem:[%s3 + $0x8] sm:$0xf]
  %v1304 = vld [vmem:[%s3 + $0xc] sm:$0xf]
  %v1305 = vld [vmem:[%s3 + $0x10] sm:$0xf]
  %v1306 = vld [vmem:[%s3 + $0x14] sm:$0xf]
  %v1307 = vld [vmem:[%s3 + $0x18] sm:$0xf]
  %v1308 = vld [vmem:[%s3 + $0x1c] sm:$0xf]
  %v1309 = vld [vmem:[%s3 + $0x20] sm:$0xf]
  %v1310 = vld [vmem:[%s3 + $0x24] sm:$0xf]
  %v1311 = vld [vmem:[%s3 + $0x28] sm:$0xf]
  %v1312 = vld [vmem:[%s3 + $0x2c] sm:$0xf]
  %v1313 = vld [vmem:[%s3 + $0x30] sm:$0xf]
  %v1314 = vld [vmem:[%s3 + $0x34] sm:$0xf]
  %v1315 = vld [vmem:[%s3 + $0x38] sm:$0xf]
  %v1316 = vld [vmem:[%s3 + $0x3c] sm:$0xf]
  %v1333 = vunpack.c.l.b16 %v1301
  %v1334 = vunpack.c.l.b16 %v1302
  %v1335 = vunpack.c.l.b16 %v1303
  %v1336 = vunpack.c.l.b16 %v1304
  %v1337 = vunpack.c.l.b16 %v1305
  %v1338 = vunpack.c.l.b16 %v1306
  %v1339 = vunpack.c.l.b16 %v1307
  %v1340 = vunpack.c.l.b16 %v1308
  %v1341 = vunpack.c.l.b16 %v1309
  %v1342 = vunpack.c.l.b16 %v1310
  %v1343 = vunpack.c.l.b16 %v1311
  %v1344 = vunpack.c.l.b16 %v1312
  %v1345 = vunpack.c.l.b16 %v1313
  %v1346 = vunpack.c.l.b16 %v1314
  %v1347 = vunpack.c.l.b16 %v1315
  %v1348 = vunpack.c.l.b16 %v1316
  %v1349 = vpack.c.b16 %v1334, %v1333
  %v1350 = vpack.c.b16 %v1336, %v1335
  %v1351 = vpack.c.b16 %v1338, %v1337
  %v1352 = vpack.c.b16 %v1340, %v1339
  %v1353 = vpack.c.b16 %v1342, %v1341
  %v1354 = vpack.c.b16 %v1344, %v1343
  %v1355 = vpack.c.b16 %v1346, %v1345
  %v1356 = vpack.c.b16 %v1348, %v1347
  %1365 = vmatprep.subr.bf16.mxu0 0
  %1366 = vmatpush1.bf16.msra.mxu0 %v1349
  %1367 = vmatprep.subr.bf16.mxu0 0
  %1368 = vmatpush1.bf16.msra.mxu0 %v1350
  %1369 = vmatprep.subr.bf16.mxu0 0
  %1370 = vmatpush1.bf16.msra.mxu0 %v1351
  %1371 = vmatprep.subr.bf16.mxu0 0
  %1372 = vmatpush1.bf16.msra.mxu0 %v1352
  %1373 = vmatprep.subr.bf16.mxu0 0
  %1374 = vmatpush1.bf16.msra.mxu0 %v1353
  %1375 = vmatprep.subr.bf16.mxu0 0
  %1376 = vmatpush1.bf16.msra.mxu0 %v1354
  %1377 = vmatprep.subr.bf16.mxu0 0
  %1378 = vmatpush1.bf16.msra.mxu0 %v1355
  %1379 = vmatprep.subr.bf16.mxu0 0
  %1380 = vmatpush1.bf16.msra.mxu0 %v1356
  %1381 = vmatprep.subr.bf16.mxu0 0
  %1382 = vmatpush1.bf16.msra.mxu0 0
  %1383 = vmatprep.subr.bf16.mxu0 0
  %1384 = vmatpush1.bf16.msra.mxu0 0
  %1385 = vmatprep.subr.bf16.mxu0 0
  %1386 = vmatpush1.bf16.msra.mxu0 0
  %1387 = vmatprep.subr.bf16.mxu0 0
  %1388 = vmatpush1.bf16.msra.mxu0 0
  %1389 = vmatprep.subr.bf16.mxu0 0
  %1390 = vmatpush1.bf16.msra.mxu0 0
  %1391 = vmatprep.subr.bf16.mxu0 0
  %1392 = vmatpush1.bf16.msra.mxu0 0
  %1393 = vmatprep.subr.bf16.mxu0 0
  %1394 = vmatpush1.bf16.msra.mxu0 0
  %1395 = vmatprep.subr.bf16.mxu0 0
  %1396 = vmatpush1.bf16.msra.mxu0 0
  %1397 = vmatprep.mubr.bf16.mxu0 0
  %1398 = vmatmul.mubr.bf16.gmra.mrb[0].mxu0 %v1300
  %v1399 = vpop.f32.mrb[0].mxu0
  %v1400 = vadd.f32 0.0, %v1399
  %v1401 = vpop.f32.mrb[0].mxu0
  %v1402 = vpop.f32.mrb[0].mxu0
  %v1403 = vpop.f32.mrb[0].mxu0
  %1404 = vdwg.mxu0
  %v1405 = vadd.f32 %v953, %v1400
  %1406 = vst [vmem:[#allocation2 + $0x20] sm:$0xff] %v1405
  %v1407 = vpack.c.bf16 %v1405, %v1405
  %v1408 = vld [vmem:[%s3] sm:$0xf]
  %v1409 = vld [vmem:[%s3 + $0x4] sm:$0xf]
  %v1410 = vld [vmem:[%s3 + $0x8] sm:$0xf]
  %v1411 = vld [vmem:[%s3 + $0xc] sm:$0xf]
  %v1412 = vld [vmem:[%s3 + $0x10] sm:$0xf]
  %v1413 = vld [vmem:[%s3 + $0x14] sm:$0xf]
  %v1414 = vld [vmem:[%s3 + $0x18] sm:$0xf]
  %v1415 = vld [vmem:[%s3 + $0x1c] sm:$0xf]
  %v1416 = vld [vmem:[%s3 + $0x20] sm:$0xf]
  %v1417 = vld [vmem:[%s3 + $0x24] sm:$0xf]
  %v1418 = vld [vmem:[%s3 + $0x28] sm:$0xf]
  %v1419 = vld [vmem:[%s3 + $0x2c] sm:$0xf]
  %v1420 = vld [vmem:[%s3 + $0x30] sm:$0xf]
  %v1421 = vld [vmem:[%s3 + $0x34] sm:$0xf]
  %v1422 = vld [vmem:[%s3 + $0x38] sm:$0xf]
  %v1423 = vld [vmem:[%s3 + $0x3c] sm:$0xf]
  %v1440 = vunpack.c.l.b16 %v1408
  %v1441 = vunpack.c.l.b16 %v1409
  %v1442 = vunpack.c.l.b16 %v1410
  %v1443 = vunpack.c.l.b16 %v1411
  %v1444 = vunpack.c.l.b16 %v1412
  %v1445 = vunpack.c.l.b16 %v1413
  %v1446 = vunpack.c.l.b16 %v1414
  %v1447 = vunpack.c.l.b16 %v1415
  %v1448 = vunpack.c.l.b16 %v1416
  %v1449 = vunpack.c.l.b16 %v1417
  %v1450 = vunpack.c.l.b16 %v1418
  %v1451 = vunpack.c.l.b16 %v1419
  %v1452 = vunpack.c.l.b16 %v1420
  %v1453 = vunpack.c.l.b16 %v1421
  %v1454 = vunpack.c.l.b16 %v1422
  %v1455 = vunpack.c.l.b16 %v1423
  %v1456 = vpack.c.b16 %v1441, %v1440
  %v1457 = vpack.c.b16 %v1443, %v1442
  %v1458 = vpack.c.b16 %v1445, %v1444
  %v1459 = vpack.c.b16 %v1447, %v1446
  %v1460 = vpack.c.b16 %v1449, %v1448
  %v1461 = vpack.c.b16 %v1451, %v1450
  %v1462 = vpack.c.b16 %v1453, %v1452
  %v1463 = vpack.c.b16 %v1455, %v1454
  %1472 = vmatprep.subr.bf16.mxu0 0
  %1473 = vmatpush1.bf16.msra.mxu0 %v1456
  %1474 = vmatprep.subr.bf16.mxu0 0
  %1475 = vmatpush1.bf16.msra.mxu0 %v1457
  %1476 = vmatprep.subr.bf16.mxu0 0
  %1477 = vmatpush1.bf16.msra.mxu0 %v1458
  %1478 = vmatprep.subr.bf16.mxu0 0
  %1479 = vmatpush1.bf16.msra.mxu0 %v1459
  %1480 = vmatprep.subr.bf16.mxu0 0
  %1481 = vmatpush1.bf16.msra.mxu0 %v1460
  %1482 = vmatprep.subr.bf16.mxu0 0
  %1483 = vmatpush1.bf16.msra.mxu0 %v1461
  %1484 = vmatprep.subr.bf16.mxu0 0
  %1485 = vmatpush1.bf16.msra.mxu0 %v1462
  %1486 = vmatprep.subr.bf16.mxu0 0
  %1487 = vmatpush1.bf16.msra.mxu0 %v1463
  %1488 = vmatprep.subr.bf16.mxu0 0
  %1489 = vmatpush1.bf16.msra.mxu0 0
  %1490 = vmatprep.subr.bf16.mxu0 0
  %1491 = vmatpush1.bf16.msra.mxu0 0
  %1492 = vmatprep.subr.bf16.mxu0 0
  %1493 = vmatpush1.bf16.msra.mxu0 0
  %1494 = vmatprep.subr.bf16.mxu0 0
  %1495 = vmatpush1.bf16.msra.mxu0 0
  %1496 = vmatprep.subr.bf16.mxu0 0
  %1497 = vmatpush1.bf16.msra.mxu0 0
  %1498 = vmatprep.subr.bf16.mxu0 0
  %1499 = vmatpush1.bf16.msra.mxu0 0
  %1500 = vmatprep.subr.bf16.mxu0 0
  %1501 = vmatpush1.bf16.msra.mxu0 0
  %1502 = vmatprep.subr.bf16.mxu0 0
  %1503 = vmatpush1.bf16.msra.mxu0 0
  %1504 = vmatprep.mubr.bf16.mxu0 0
  %1505 = vmatmul.mubr.bf16.gmra.mrb[0].mxu0 %v1407
  %v1506 = vpop.f32.mrb[0].mxu0
  %v1507 = vadd.f32 0.0, %v1506
  %v1508 = vpop.f32.mrb[0].mxu0
  %v1509 = vpop.f32.mrb[0].mxu0
  %v1510 = vpop.f32.mrb[0].mxu0
  %1511 = vdwg.mxu0
  %v1512 = vadd.f32 %v959, %v1507
  %1513 = vst [vmem:[#allocation2 + $0x28] sm:$0xff] %v1512
  %v1514 = vpack.c.bf16 %v1512, %v1512
  %v1515 = vld [vmem:[%s3] sm:$0xf]
  %v1516 = vld [vmem:[%s3 + $0x4] sm:$0xf]
  %v1517 = vld [vmem:[%s3 + $0x8] sm:$0xf]
  %v1518 = vld [vmem:[%s3 + $0xc] sm:$0xf]
  %v1519 = vld [vmem:[%s3 + $0x10] sm:$0xf]
  %v1520 = vld [vmem:[%s3 + $0x14] sm:$0xf]
  %v1521 = vld [vmem:[%s3 + $0x18] sm:$0xf]
  %v1522 = vld [vmem:[%s3 + $0x1c] sm:$0xf]
  %v1523 = vld [vmem:[%s3 + $0x20] sm:$0xf]
  %v1524 = vld [vmem:[%s3 + $0x24] sm:$0xf]
  %v1525 = vld [vmem:[%s3 + $0x28] sm:$0xf]
  %v1526 = vld [vmem:[%s3 + $0x2c] sm:$0xf]
  %v1527 = vld [vmem:[%s3 + $0x30] sm:$0xf]
  %v1528 = vld [vmem:[%s3 + $0x34] sm:$0xf]
  %v1529 = vld [vmem:[%s3 + $0x38] sm:$0xf]
  %v1530 = vld [vmem:[%s3 + $0x3c] sm:$0xf]
  %v1547 = vunpack.c.l.b16 %v1515
  %v1548 = vunpack.c.l.b16 %v1516
  %v1549 = vunpack.c.l.b16 %v1517
  %v1550 = vunpack.c.l.b16 %v1518
  %v1551 = vunpack.c.l.b16 %v1519
  %v1552 = vunpack.c.l.b16 %v1520
  %v1553 = vunpack.c.l.b16 %v1521
  %v1554 = vunpack.c.l.b16 %v1522
  %v1555 = vunpack.c.l.b16 %v1523
  %v1556 = vunpack.c.l.b16 %v1524
  %v1557 = vunpack.c.l.b16 %v1525
  %v1558 = vunpack.c.l.b16 %v1526
  %v1559 = vunpack.c.l.b16 %v1527
  %v1560 = vunpack.c.l.b16 %v1528
  %v1561 = vunpack.c.l.b16 %v1529
  %v1562 = vunpack.c.l.b16 %v1530
  %v1563 = vpack.c.b16 %v1548, %v1547
  %v1564 = vpack.c.b16 %v1550, %v1549
  %v1565 = vpack.c.b16 %v1552, %v1551
  %v1566 = vpack.c.b16 %v1554, %v1553
  %v1567 = vpack.c.b16 %v1556, %v1555
  %v1568 = vpack.c.b16 %v1558, %v1557
  %v1569 = vpack.c.b16 %v1560, %v1559
  %v1570 = vpack.c.b16 %v1562, %v1561
  %1579 = vmatprep.subr.bf16.mxu0 0
  %1580 = vmatpush1.bf16.msra.mxu0 %v1563
  %1581 = vmatprep.subr.bf16.mxu0 0
  %1582 = vmatpush1.bf16.msra.mxu0 %v1564
  %1583 = vmatprep.subr.bf16.mxu0 0
  %1584 = vmatpush1.bf16.msra.mxu0 %v1565
  %1585 = vmatprep.subr.bf16.mxu0 0
  %1586 = vmatpush1.bf16.msra.mxu0 %v1566
  %1587 = vmatprep.subr.bf16.mxu0 0
  %1588 = vmatpush1.bf16.msra.mxu0 %v1567
  %1589 = vmatprep.subr.bf16.mxu0 0
  %1590 = vmatpush1.bf16.msra.mxu0 %v1568
  %1591 = vmatprep.subr.bf16.mxu0 0
  %1592 = vmatpush1.bf16.msra.mxu0 %v1569
  %1593 = vmatprep.subr.bf16.mxu0 0
  %1594 = vmatpush1.bf16.msra.mxu0 %v1570
  %1595 = vmatprep.subr.bf16.mxu0 0
  %1596 = vmatpush1.bf16.msra.mxu0 0
  %1597 = vmatprep.subr.bf16.mxu0 0
  %1598 = vmatpush1.bf16.msra.mxu0 0
  %1599 = vmatprep.subr.bf16.mxu0 0
  %1600 = vmatpush1.bf16.msra.mxu0 0
  %1601 = vmatprep.subr.bf16.mxu0 0
  %1602 = vmatpush1.bf16.msra.mxu0 0
  %1603 = vmatprep.subr.bf16.mxu0 0
  %1604 = vmatpush1.bf16.msra.mxu0 0
  %1605 = vmatprep.subr.bf16.mxu0 0
  %1606 = vmatpush1.bf16.msra.mxu0 0
  %1607 = vmatprep.subr.bf16.mxu0 0
  %1608 = vmatpush1.bf16.msra.mxu0 0
  %1609 = vmatprep.subr.bf16.mxu0 0
  %1610 = vmatpush1.bf16.msra.mxu0 0
  %1611 = vmatprep.mubr.bf16.mxu0 0
  %1612 = vmatmul.mubr.bf16.gmra.mrb[0].mxu0 %v1514
  %v1613 = vpop.f32.mrb[0].mxu0
  %v1614 = vadd.f32 0.0, %v1613
  %v1615 = vpop.f32.mrb[0].mxu0
  %v1616 = vpop.f32.mrb[0].mxu0
  %v1617 = vpop.f32.mrb[0].mxu0
  %1618 = vdwg.mxu0
  %v1619 = vadd.f32 %v963, %v1614
  %1620 = vst [vmem:[#allocation2 + $0x30] sm:$0xff] %v1619
  %v1621 = vpack.c.bf16 %v1619, %v1619
  %v1622 = vld [vmem:[%s3] sm:$0xf]
  %v1623 = vld [vmem:[%s3 + $0x4] sm:$0xf]
  %v1624 = vld [vmem:[%s3 + $0x8] sm:$0xf]
  %v1625 = vld [vmem:[%s3 + $0xc] sm:$0xf]
  %v1626 = vld [vmem:[%s3 + $0x10] sm:$0xf]
  %v1627 = vld [vmem:[%s3 + $0x14] sm:$0xf]
  %v1628 = vld [vmem:[%s3 + $0x18] sm:$0xf]
  %v1629 = vld [vmem:[%s3 + $0x1c] sm:$0xf]
  %v1630 = vld [vmem:[%s3 + $0x20] sm:$0xf]
  %v1631 = vld [vmem:[%s3 + $0x24] sm:$0xf]
  %v1632 = vld [vmem:[%s3 + $0x28] sm:$0xf]
  %v1633 = vld [vmem:[%s3 + $0x2c] sm:$0xf]
  %v1634 = vld [vmem:[%s3 + $0x30] sm:$0xf]
  %v1635 = vld [vmem:[%s3 + $0x34] sm:$0xf]
  %v1636 = vld [vmem:[%s3 + $0x38] sm:$0xf]
  %v1637 = vld [vmem:[%s3 + $0x3c] sm:$0xf]
  %v1654 = vunpack.c.l.b16 %v1622
  %v1655 = vunpack.c.l.b16 %v1623
  %v1656 = vunpack.c.l.b16 %v1624
  %v1657 = vunpack.c.l.b16 %v1625
  %v1658 = vunpack.c.l.b16 %v1626
  %v1659 = vunpack.c.l.b16 %v1627
  %v1660 = vunpack.c.l.b16 %v1628
  %v1661 = vunpack.c.l.b16 %v1629
  %v1662 = vunpack.c.l.b16 %v1630
  %v1663 = vunpack.c.l.b16 %v1631
  %v1664 = vunpack.c.l.b16 %v1632
  %v1665 = vunpack.c.l.b16 %v1633
  %v1666 = vunpack.c.l.b16 %v1634
  %v1667 = vunpack.c.l.b16 %v1635
  %v1668 = vunpack.c.l.b16 %v1636
  %v1669 = vunpack.c.l.b16 %v1637
  %v1670 = vpack.c.b16 %v1655, %v1654
  %v1671 = vpack.c.b16 %v1657, %v1656
  %v1672 = vpack.c.b16 %v1659, %v1658
  %v1673 = vpack.c.b16 %v1661, %v1660
  %v1674 = vpack.c.b16 %v1663, %v1662
  %v1675 = vpack.c.b16 %v1665, %v1664
  %v1676 = vpack.c.b16 %v1667, %v1666
  %v1677 = vpack.c.b16 %v1669, %v1668
  %1686 = vmatprep.subr.bf16.mxu0 0
  %1687 = vmatpush1.bf16.msra.mxu0 %v1670
  %1688 = vmatprep.subr.bf16.mxu0 0
  %1689 = vmatpush1.bf16.msra.mxu0 %v1671
  %1690 = vmatprep.subr.bf16.mxu0 0
  %1691 = vmatpush1.bf16.msra.mxu0 %v1672
  %1692 = vmatprep.subr.bf16.mxu0 0
  %1693 = vmatpush1.bf16.msra.mxu0 %v1673
  %1694 = vmatprep.subr.bf16.mxu0 0
  %1695 = vmatpush1.bf16.msra.mxu0 %v1674
  %1696 = vmatprep.subr.bf16.mxu0 0
  %1697 = vmatpush1.bf16.msra.mxu0 %v1675
  %1698 = vmatprep.subr.bf16.mxu0 0
  %1699 = vmatpush1.bf16.msra.mxu0 %v1676
  %1700 = vmatprep.subr.bf16.mxu0 0
  %1701 = vmatpush1.bf16.msra.mxu0 %v1677
  %1702 = vmatprep.subr.bf16.mxu0 0
  %1703 = vmatpush1.bf16.msra.mxu0 0
  %1704 = vmatprep.subr.bf16.mxu0 0
  %1705 = vmatpush1.bf16.msra.mxu0 0
  %1706 = vmatprep.subr.bf16.mxu0 0
  %1707 = vmatpush1.bf16.msra.mxu0 0
  %1708 = vmatprep.subr.bf16.mxu0 0
  %1709 = vmatpush1.bf16.msra.mxu0 0
  %1710 = vmatprep.subr.bf16.mxu0 0
  %1711 = vmatpush1.bf16.msra.mxu0 0
  %1712 = vmatprep.subr.bf16.mxu0 0
  %1713 = vmatpush1.bf16.msra.mxu0 0
  %1714 = vmatprep.subr.bf16.mxu0 0
  %1715 = vmatpush1.bf16.msra.mxu0 0
  %1716 = vmatprep.subr.bf16.mxu0 0
  %1717 = vmatpush1.bf16.msra.mxu0 0
  %1718 = vmatprep.mubr.bf16.mxu0 0
  %1719 = vmatmul.mubr.bf16.gmra.mrb[0].mxu0 %v1621
  %v1720 = vpop.f32.mrb[0].mxu0
  %v1721 = vadd.f32 0.0, %v1720
  %v1722 = vpop.f32.mrb[0].mxu0
  %v1723 = vpop.f32.mrb[0].mxu0
  %v1724 = vpop.f32.mrb[0].mxu0
  %1725 = vdwg.mxu0
  %v1726 = vadd.f32 %v969, %v1721
  %1727 = vst [vmem:[#allocation2 + $0x38] sm:$0xff] %v1726
  %v1728 = vpack.c.bf16 %v1726, %v1726
  %v1729 = vld [vmem:[%s3] sm:$0xf]
  %v1730 = vld [vmem:[%s3 + $0x4] sm:$0xf]
  %v1731 = vld [vmem:[%s3 + $0x8] sm:$0xf]
  %v1732 = vld [vmem:[%s3 + $0xc] sm:$0xf]
  %v1733 = vld [vmem:[%s3 + $0x10] sm:$0xf]
  %v1734 = vld [vmem:[%s3 + $0x14] sm:$0xf]
  %v1735 = vld [vmem:[%s3 + $0x18] sm:$0xf]
  %v1736 = vld [vmem:[%s3 + $0x1c] sm:$0xf]
  %v1737 = vld [vmem:[%s3 + $0x20] sm:$0xf]
  %v1738 = vld [vmem:[%s3 + $0x24] sm:$0xf]
  %v1739 = vld [vmem:[%s3 + $0x28] sm:$0xf]
  %v1740 = vld [vmem:[%s3 + $0x2c] sm:$0xf]
  %v1741 = vld [vmem:[%s3 + $0x30] sm:$0xf]
  %v1742 = vld [vmem:[%s3 + $0x34] sm:$0xf]
  %v1743 = vld [vmem:[%s3 + $0x38] sm:$0xf]
  %v1744 = vld [vmem:[%s3 + $0x3c] sm:$0xf]
  %v1761 = vunpack.c.l.b16 %v1729
  %v1762 = vunpack.c.l.b16 %v1730
  %v1763 = vunpack.c.l.b16 %v1731
  %v1764 = vunpack.c.l.b16 %v1732
  %v1765 = vunpack.c.l.b16 %v1733
  %v1766 = vunpack.c.l.b16 %v1734
  %v1767 = vunpack.c.l.b16 %v1735
  %v1768 = vunpack.c.l.b16 %v1736
  %v1769 = vunpack.c.l.b16 %v1737
  %v1770 = vunpack.c.l.b16 %v1738
  %v1771 = vunpack.c.l.b16 %v1739
  %v1772 = vunpack.c.l.b16 %v1740
  %v1773 = vunpack.c.l.b16 %v1741
  %v1774 = vunpack.c.l.b16 %v1742
  %v1775 = vunpack.c.l.b16 %v1743
  %v1776 = vunpack.c.l.b16 %v1744
  %v1777 = vpack.c.b16 %v1762, %v1761
  %v1778 = vpack.c.b16 %v1764, %v1763
  %v1779 = vpack.c.b16 %v1766, %v1765
  %v1780 = vpack.c.b16 %v1768, %v1767
  %v1781 = vpack.c.b16 %v1770, %v1769
  %v1782 = vpack.c.b16 %v1772, %v1771
  %v1783 = vpack.c.b16 %v1774, %v1773
  %v1784 = vpack.c.b16 %v1776, %v1775
  %1793 = vmatprep.subr.bf16.mxu0 0
  %1794 = vmatpush1.bf16.msra.mxu0 %v1777
  %1795 = vmatprep.subr.bf16.mxu0 0
  %1796 = vmatpush1.bf16.msra.mxu0 %v1778
  %1797 = vmatprep.subr.bf16.mxu0 0
  %1798 = vmatpush1.bf16.msra.mxu0 %v1779
  %1799 = vmatprep.subr.bf16.mxu0 0
  %1800 = vmatpush1.bf16.msra.mxu0 %v1780
  %1801 = vmatprep.subr.bf16.mxu0 0
  %1802 = vmatpush1.bf16.msra.mxu0 %v1781
  %1803 = vmatprep.subr.bf16.mxu0 0
  %1804 = vmatpush1.bf16.msra.mxu0 %v1782
  %1805 = vmatprep.subr.bf16.mxu0 0
  %1806 = vmatpush1.bf16.msra.mxu0 %v1783
  %1807 = vmatprep.subr.bf16.mxu0 0
  %1808 = vmatpush1.bf16.msra.mxu0 %v1784
  %1809 = vmatprep.subr.bf16.mxu0 0
  %1810 = vmatpush1.bf16.msra.mxu0 0
  %1811 = vmatprep.subr.bf16.mxu0 0
  %1812 = vmatpush1.bf16.msra.mxu0 0
  %1813 = vmatprep.subr.bf16.mxu0 0
  %1814 = vmatpush1.bf16.msra.mxu0 0
  %1815 = vmatprep.subr.bf16.mxu0 0
  %1816 = vmatpush1.bf16.msra.mxu0 0
  %1817 = vmatprep.subr.bf16.mxu0 0
  %1818 = vmatpush1.bf16.msra.mxu0 0
  %1819 = vmatprep.subr.bf16.mxu0 0
  %1820 = vmatpush1.bf16.msra.mxu0 0
  %1821 = vmatprep.subr.bf16.mxu0 0
  %1822 = vmatpush1.bf16.msra.mxu0 0
  %1823 = vmatprep.subr.bf16.mxu0 0
  %1824 = vmatpush1.bf16.msra.mxu0 0
  %1825 = vmatprep.mubr.bf16.mxu0 0
  %1826 = vmatmul.mubr.bf16.gmra.mrb[0].mxu0 %v1728
  %v1827 = vpop.f32.mrb[0].mxu0
  %v1828 = vadd.f32 0.0, %v1827
  %v1829 = vpop.f32.mrb[0].mxu0
  %v1830 = vpop.f32.mrb[0].mxu0
  %v1831 = vpop.f32.mrb[0].mxu0
  %1832 = vdwg.mxu0
  %v1833 = vadd.f32 %v973, %v1828
  %1834 = vst [vmem:[%s7] sm:$0xff] %v1833
  %v1835 = vld [vmem:[#allocation2] sm:$0xff]
  %v1836 = vld [vmem:[#allocation2 + $0x8] sm:$0xff]
  %v1837 = vld [vmem:[#allocation2 + $0x10] sm:$0xff]
  %v1838 = vld [vmem:[#allocation2 + $0x18] sm:$0xff]
  %v1839 = vld [vmem:[#allocation2 + $0x20] sm:$0xff]
  %v1840 = vld [vmem:[#allocation2 + $0x28] sm:$0xff]
  %v1841 = vld [vmem:[#allocation2 + $0x30] sm:$0xff]
  %v1842 = vld [vmem:[#allocation2 + $0x38] sm:$0xff]
  %v1843 = vpack.c.bf16 %v1836, %v1835
  %v1844 = vpack.c.bf16 %v1838, %v1837
  %v1845 = vpack.c.bf16 %v1840, %v1839
  %v1846 = vpack.c.bf16 %v1842, %v1841
  %v1847 = vld [vmem:[%s4] sm:$0xf]
  %v1848 = vld [vmem:[%s4 + $0x4] sm:$0xf]
  %v1849 = vld [vmem:[%s4 + $0x8] sm:$0xf]
  %v1850 = vld [vmem:[%s4 + $0xc] sm:$0xf]
  %v1851 = vld [vmem:[%s4 + $0x10] sm:$0xf]
  %v1852 = vld [vmem:[%s4 + $0x14] sm:$0xf]
  %v1853 = vld [vmem:[%s4 + $0x18] sm:$0xf]
  %v1854 = vld [vmem:[%s4 + $0x1c] sm:$0xf]
  %v1855 = vld [vmem:[%s4 + $0x20] sm:$0xf]
  %v1856 = vld [vmem:[%s4 + $0x24] sm:$0xf]
  %v1857 = vld [vmem:[%s4 + $0x28] sm:$0xf]
  %v1858 = vld [vmem:[%s4 + $0x2c] sm:$0xf]
  %v1859 = vld [vmem:[%s4 + $0x30] sm:$0xf]
  %v1860 = vld [vmem:[%s4 + $0x34] sm:$0xf]
  %v1861 = vld [vmem:[%s4 + $0x38] sm:$0xf]
  %v1862 = vld [vmem:[%s4 + $0x3c] sm:$0xf]
  %v1879 = vunpack.c.l.b16 %v1847
  %v1880 = vunpack.c.l.b16 %v1848
  %v1881 = vunpack.c.l.b16 %v1849
  %v1882 = vunpack.c.l.b16 %v1850
  %v1883 = vunpack.c.l.b16 %v1851
  %v1884 = vunpack.c.l.b16 %v1852
  %v1885 = vunpack.c.l.b16 %v1853
  %v1886 = vunpack.c.l.b16 %v1854
  %v1887 = vunpack.c.l.b16 %v1855
  %v1888 = vunpack.c.l.b16 %v1856
  %v1889 = vunpack.c.l.b16 %v1857
  %v1890 = vunpack.c.l.b16 %v1858
  %v1891 = vunpack.c.l.b16 %v1859
  %v1892 = vunpack.c.l.b16 %v1860
  %v1893 = vunpack.c.l.b16 %v1861
  %v1894 = vunpack.c.l.b16 %v1862
  %v1895 = vpack.c.b16 %v1880, %v1879
  %v1896 = vpack.c.b16 %v1882, %v1881
  %v1897 = vpack.c.b16 %v1884, %v1883
  %v1898 = vpack.c.b16 %v1886, %v1885
  %v1899 = vpack.c.b16 %v1888, %v1887
  %v1900 = vpack.c.b16 %v1890, %v1889
  %v1901 = vpack.c.b16 %v1892, %v1891
  %v1902 = vpack.c.b16 %v1894, %v1893
  %1911 = vmatprep.subr.bf16.mxu0 0
  %1912 = vmatpush1.bf16.msra.mxu0 %v1895
  %1913 = vmatprep.subr.bf16.mxu0 0
  %1914 = vmatpush1.bf16.msra.mxu0 %v1896
  %1915 = vmatprep.subr.bf16.mxu0 0
  %1916 = vmatpush1.bf16.msra.mxu0 %v1897
  %1917 = vmatprep.subr.bf16.mxu0 0
  %1918 = vmatpush1.bf16.msra.mxu0 %v1898
  %1919 = vmatprep.subr.bf16.mxu0 0
  %1920 = vmatpush1.bf16.msra.mxu0 %v1899
  %1921 = vmatprep.subr.bf16.mxu0 0
  %1922 = vmatpush1.bf16.msra.mxu0 %v1900
  %1923 = vmatprep.subr.bf16.mxu0 0
  %1924 = vmatpush1.bf16.msra.mxu0 %v1901
  %1925 = vmatprep.subr.bf16.mxu0 0
  %1926 = vmatpush1.bf16.msra.mxu0 %v1902
  %1927 = vmatprep.subr.bf16.mxu0 0
  %1928 = vmatpush1.bf16.msra.mxu0 0
  %1929 = vmatprep.subr.bf16.mxu0 0
  %1930 = vmatpush1.bf16.msra.mxu0 0
  %1931 = vmatprep.subr.bf16.mxu0 0
  %1932 = vmatpush1.bf16.msra.mxu0 0
  %1933 = vmatprep.subr.bf16.mxu0 0
  %1934 = vmatpush1.bf16.msra.mxu0 0
  %1935 = vmatprep.subr.bf16.mxu0 0
  %1936 = vmatpush1.bf16.msra.mxu0 0
  %1937 = vmatprep.subr.bf16.mxu0 0
  %1938 = vmatpush1.bf16.msra.mxu0 0
  %1939 = vmatprep.subr.bf16.mxu0 0
  %1940 = vmatpush1.bf16.msra.mxu0 0
  %1941 = vmatprep.subr.bf16.mxu0 0
  %1942 = vmatpush1.bf16.msra.mxu0 0
  %1943 = vmatprep.mubr.bf16.mxu0 0
  %1944 = vmatmul.mubr.bf16.gmra.mrb[0].mxu0 %v1843
  %v1945 = vpop.f32.mrb[0].mxu0
  %v1946 = vadd.f32 0.0, %v1945
  %v1947 = vpop.f32.mrb[0].mxu0
  %v1948 = vpop.f32.mrb[0].mxu0
  %v1949 = vadd.f32 0.0, %v1948
  %v1950 = vpop.f32.mrb[0].mxu0
  %1951 = vmatprep.mubr.bf16.mxu0 0
  %1952 = vmatmul.mubr.bf16.gmra.mrb[0].mxu0 %v1844
  %v1953 = vpop.f32.mrb[0].mxu0
  %v1954 = vadd.f32 0.0, %v1953
  %v1955 = vpop.f32.mrb[0].mxu0
  %v1956 = vpop.f32.mrb[0].mxu0
  %v1957 = vadd.f32 0.0, %v1956
  %v1958 = vpop.f32.mrb[0].mxu0
  %1959 = vmatprep.mubr.bf16.mxu0 0
  %1960 = vmatmul.mubr.bf16.gmra.mrb[0].mxu0 %v1845
  %v1961 = vpop.f32.mrb[0].mxu0
  %v1962 = vadd.f32 0.0, %v1961
  %v1963 = vpop.f32.mrb[0].mxu0
  %v1964 = vpop.f32.mrb[0].mxu0
  %v1965 = vadd.f32 0.0, %v1964
  %v1966 = vpop.f32.mrb[0].mxu0
  %1967 = vmatprep.mubr.bf16.mxu0 0
  %1968 = vmatmul.mubr.bf16.gmra.mrb[0].mxu0 %v1846
  %v1969 = vpop.f32.mrb[0].mxu0
  %v1970 = vadd.f32 0.0, %v1969
  %v1971 = vpop.f32.mrb[0].mxu0
  %v1972 = vpop.f32.mrb[0].mxu0
  %v1973 = vadd.f32 0.0, %v1972
  %v1974 = vpop.f32.mrb[0].mxu0
  %1975 = vdwg.mxu0
  %v1976 = vadd.f32 %v941, %v1946
  %v1977 = vadd.f32 %v945, %v1949
  %v1978 = vadd.f32 %v951, %v1954
  %v1979 = vadd.f32 %v955, %v1957
  %v1980 = vadd.f32 %v961, %v1962
  %v1981 = vadd.f32 %v965, %v1965
  %v1982 = vadd.f32 %v971, %v1970
  %v1983 = vadd.f32 %v975, %v1973
  %vm1984 = vcmask 64512
  %v1985 = vsel %vm1984, %v1976, -inf
  %1986 = vmax.xlane.f32.xlu0 %v1985
  %v1987 = vpop.xlane.xlu0 %1986
  %v1988 = vsel %vm1984, %v1977, -inf
  %1989 = vmax.xlane.f32.xlu0 %v1988
  %v1990 = vpop.xlane.xlu0 %1989
  %v1991 = vsel %vm1984, %v1978, -inf
  %1992 = vmax.xlane.f32.xlu0 %v1991
  %v1993 = vpop.xlane.xlu0 %1992
  %v1994 = vsel %vm1984, %v1979, -inf
  %1995 = vmax.xlane.f32.xlu0 %v1994
  %v1996 = vpop.xlane.xlu0 %1995
  %v1997 = vsel %vm1984, %v1980, -inf
  %1998 = vmax.xlane.f32.xlu0 %v1997
  %v1999 = vpop.xlane.xlu0 %1998
  %v2000 = vsel %vm1984, %v1981, -inf
  %2001 = vmax.xlane.f32.xlu0 %v2000
  %v2002 = vpop.xlane.xlu0 %2001
  %v2003 = vsel %vm1984, %v1982, -inf
  %2004 = vmax.xlane.f32.xlu0 %v2003
  %v2005 = vpop.xlane.xlu0 %2004
  %v2006 = vsel %vm1984, %v1983, -inf
  %2007 = vmax.xlane.f32.xlu0 %v2006
  %v2008 = vpop.xlane.xlu0 %2007
  %v2009 = vsub.f32 %v1976, %v1987
  %v2010 = vsub.f32 %v1977, %v1990
  %v2011 = vsub.f32 %v1978, %v1993
  %v2012 = vsub.f32 %v1979, %v1996
  %v2013 = vsub.f32 %v1980, %v1999
  %v2014 = vsub.f32 %v1981, %v2002
  %v2015 = vsub.f32 %v1982, %v2005
  %v2016 = vsub.f32 %v1983, %v2008
  %v2017 = vmul.f32 %v2009, 1.442695
  %v2018 = vpow.pop %v2017
  %v2019 = vmul.f32 %v2010, 1.442695
  %v2020 = vpow.pop %v2019
  %v2021 = vmul.f32 %v2011, 1.442695
  %v2022 = vpow.pop %v2021
  %v2023 = vmul.f32 %v2012, 1.442695
  %v2024 = vpow.pop %v2023
  %v2025 = vmul.f32 %v2013, 1.442695
  %v2026 = vpow.pop %v2025
  %v2027 = vmul.f32 %v2014, 1.442695
  %v2028 = vpow.pop %v2027
  %v2029 = vmul.f32 %v2015, 1.442695
  %v2030 = vpow.pop %v2029
  %v2031 = vmul.f32 %v2016, 1.442695
  %v2032 = vpow.pop %v2031
  %v2033 = vsel %vm1984, %v2018, 0.0
  %2034 = vadd.xlane.f32.xlu0 %v2033
  %v2035 = vpop.xlane.xlu0 %2034
  %v2036 = vsel %vm1984, %v2020, 0.0
  %2037 = vadd.xlane.f32.xlu0 %v2036
  %v2038 = vpop.xlane.xlu0 %2037
  %v2039 = vsel %vm1984, %v2022, 0.0
  %2040 = vadd.xlane.f32.xlu0 %v2039
  %v2041 = vpop.xlane.xlu0 %2040
  %v2042 = vsel %vm1984, %v2024, 0.0
  %2043 = vadd.xlane.f32.xlu0 %v2042
  %v2044 = vpop.xlane.xlu0 %2043
  %v2045 = vsel %vm1984, %v2026, 0.0
  %2046 = vadd.xlane.f32.xlu0 %v2045
  %v2047 = vpop.xlane.xlu0 %2046
  %v2048 = vsel %vm1984, %v2028, 0.0
  %2049 = vadd.xlane.f32.xlu0 %v2048
  %v2050 = vpop.xlane.xlu0 %2049
  %v2051 = vsel %vm1984, %v2030, 0.0
  %2052 = vadd.xlane.f32.xlu0 %v2051
  %v2053 = vpop.xlane.xlu0 %2052
  %v2054 = vsel %vm1984, %v2032, 0.0
  %2055 = vadd.xlane.f32.xlu0 %v2054
  %v2056 = vpop.xlane.xlu0 %2055
  %v2057 = vlog2.pop %v2035
  %v2058 = vmul.f32 %v2057, 0.6931472
  %v2059 = vlog2.pop %v2038
  %v2060 = vmul.f32 %v2059, 0.6931472
  %v2061 = vlog2.pop %v2041
  %v2062 = vmul.f32 %v2061, 0.6931472
  %v2063 = vlog2.pop %v2044
  %v2064 = vmul.f32 %v2063, 0.6931472
  %v2065 = vlog2.pop %v2047
  %v2066 = vmul.f32 %v2065, 0.6931472
  %v2067 = vlog2.pop %v2050
  %v2068 = vmul.f32 %v2067, 0.6931472
  %v2069 = vlog2.pop %v2053
  %v2070 = vmul.f32 %v2069, 0.6931472
  %v2071 = vlog2.pop %v2056
  %v2072 = vmul.f32 %v2071, 0.6931472
  %v2073 = vadd.f32 %v1987, %v2058
  %v2074 = vadd.f32 %v1990, %v2060
  %v2075 = vadd.f32 %v1993, %v2062
  %v2076 = vadd.f32 %v1996, %v2064
  %v2077 = vadd.f32 %v1999, %v2066
  %v2078 = vadd.f32 %v2002, %v2068
  %v2079 = vadd.f32 %v2005, %v2070
  %v2080 = vadd.f32 %v2008, %v2072
  %v2081 = vsub.f32 %v1976, %v2073
  %v2082 = vsub.f32 %v1977, %v2074
  %v2083 = vsub.f32 %v1978, %v2075
  %v2084 = vsub.f32 %v1979, %v2076
  %v2085 = vsub.f32 %v1980, %v2077
  %v2086 = vsub.f32 %v1981, %v2078
  %v2087 = vsub.f32 %v1982, %v2079
  %v2088 = vsub.f32 %v1983, %v2080
  %2089 = vst.msk [vmem:[%s6] sm:$0xff] %vm1984, %v2081
  %2090 = vst.msk [vmem:[%s6 + $0x8] sm:$0xff] %vm1984, %v2082
  %2091 = vst.msk [vmem:[%s6 + $0x10] sm:$0xff] %vm1984, %v2083
  %2092 = vst.msk [vmem:[%s6 + $0x18] sm:$0xff] %vm1984, %v2084
  %2093 = vst.msk [vmem:[%s6 + $0x20] sm:$0xff] %vm1984, %v2085
  %2094 = vst.msk [vmem:[%s6 + $0x28] sm:$0xff] %vm1984, %v2086
  %2095 = vst.msk [vmem:[%s6 + $0x30] sm:$0xff] %vm1984, %v2087
  %2096 = vst.msk [vmem:[%s6 + $0x38] sm:$0xff] %vm1984, %v2088
  // Predicated region
  $region26: #{rnn_forward_sequence.1} parent=0 // pred_check
    _
  $region27: #{rnn_forward_sequence.1} parent=0 // pred_check_branch
    %2098 = sbr.rel (0) target = $region29
  $region28: #{rnn_forward_sequence.1} parent=0 // pred_region
    _
  $region29: #{rnn_forward_sequence.1} parent=0 // pred_fallthru
    _
  // Predicated region
  $region30: #{rnn_forward_sequence.1} parent=0 // pred_check
    _
  $region31: #{rnn_forward_sequence.1} parent=0 // pred_check_branch
    %2100 = sbr.rel (0) target = $region33
  $region32: #{rnn_forward_sequence.1} parent=0 // pred_region
    _
  $region33: #{rnn_forward_sequence.1} parent=0 // pred_fallthru
    _
  // Predicated region
  $region34: #{rnn_forward_sequence.1} parent=0 // pred_check
    _
  $region35: #{rnn_forward_sequence.1} parent=0 // pred_check_branch
    %2102 = sbr.rel (0) target = $region37
  $region36: #{rnn_forward_sequence.1} parent=0 // pred_region
    _
  $region37: #{rnn_forward_sequence.1} parent=0 // pred_fallthru
    _
  // Predicated region
  $region38: #{rnn_forward_sequence.1} parent=0 // pred_check
    _
  $region39: #{rnn_forward_sequence.1} parent=0 // pred_check_branch
    %2104 = sbr.rel (0) target = $region41
  $region40: #{rnn_forward_sequence.1} parent=0 // pred_region
    _
  $region41: #{rnn_forward_sequence.1} parent=0 // pred_fallthru
    _

</llo_original>
